<compile_context>
chip_gen: v7x
topology: tpu7x:2x2x1
jax: 0.10.0
libtpu: 0.0.40
codegen_flags: <defaults>
</compile_context>

<pallas_src>
import math

import numpy as np
import jax
import jax.numpy as jnp
from jax import lax
from jax.experimental import pallas as pl
from jax.experimental.pallas import tpu as pltpu

# ----------------------- static configuration -----------------------
N_FEATS = 16                                              # n_feats (channels)
BASE_WIDTH = 26
SCALE = 4
WIDTH = int(math.floor(N_FEATS * (BASE_WIDTH / 64.0)))    # = 6
WIDTH_PAD = 8                                             # chunk width padded to sublane tile
NUMS = SCALE - 1                                          # = 3
RED = 8
CR = N_FEATS // RED                                       # = 2

BATCH = 2
H_IMG = 8
W_IMG = 8
LANES = BATCH * H_IMG * W_IMG                             # = 128


def _leaky(v):
    # nn.LeakyReLU(0.01): mul + max (2 VALU ops) instead of cmp+select+mul.
    return jnp.maximum(v, 0.01 * v)


def _sigmoid(v):
    # exp and approximate reciprocal both map to the EUP slot (no VALU divide).
    return pl.reciprocal(1.0 + jnp.exp(-v), approx=True)


# ----------------------------- kernel -------------------------------
def res2capa_kernel(x_ref, w1t_ref, w3k_ref, wot_ref, mask_ref,
                    poolp_ref, sels_ref,
                    caw1_ref, cab1_ref, caw2_ref, cab2_ref,
                    paw1_ref, pab1_ref, paw2_ref, pab2_ref,
                    o_ref,
                    slab_ref, cat_ref):
    x = x_ref[...]                                        # (C, L) f32
    lanes = x.shape[1]

    # ---------------- Res2neck ----------------
    # conv1 (1x1, no bias): one bf16 MXU pass, f32 accumulation.  Each scale
    # chunk is padded to 8 rows so the slices below stay sublane-aligned.
    h1 = _leaky(jnp.dot(w1t_ref[...], x.astype(jnp.bfloat16),
                        preferred_element_type=jnp.float32))      # (32, L) f32
    spx = [h1[i * WIDTH_PAD:(i + 1) * WIDTH_PAD, :] for i in range(SCALE)]

    # 3x3 stencil taps: lane rolls (XLU) + host-prebroadcast zero-pad masks.
    shifts = [dy * W_IMG + dx for dy in (-1, 0, 1) for dx in (-1, 0, 1)]
    masks = {k: mask_ref[k] for k, s in enumerate(shifts) if s != 0}   # hoisted

    sp = None
    for i in range(NUMS):
        sp = spx[i] if i == 0 else sp + spx[i]
        # Write the 9 taps into the (9*8, L) VMEM slab at static sublane
        # offsets (no jnp.concatenate copy pass).
        for k, s in enumerate(shifts):
            lo, hi = k * WIDTH_PAD, (k + 1) * WIDTH_PAD
            if s == 0:
                slab_ref[lo:hi, :] = sp                            # center tap
            else:
                slab_ref[lo:hi, :] = (
                    pltpu.roll(sp, shift=(-s) % lanes, axis=1) * masks[k])
        sp = _leaky(jnp.dot(w3k_ref[i], slab_ref[...].astype(jnp.bfloat16),
                            preferred_element_type=jnp.float32))   # (8, L) f32
        cat_ref[i * WIDTH_PAD:(i + 1) * WIDTH_PAD, :] = sp
    cat_ref[NUMS * WIDTH_PAD:(NUMS + 1) * WIDTH_PAD, :] = spx[NUMS]  # last chunk

    y = _leaky(jnp.dot(wot_ref[...], cat_ref[...].astype(jnp.bfloat16),
                       preferred_element_type=jnp.float32) + x)      # (C, L)

    # ---------------- CALayer (channel attention) ----------------
    pooled = jnp.dot(y.astype(jnp.bfloat16), poolp_ref[...],
                     preferred_element_type=jnp.float32)             # (C, N)
    z = jnp.maximum(
        jnp.dot(caw1_ref[...], pooled.astype(jnp.bfloat16),
                preferred_element_type=jnp.float32) + cab1_ref[...], 0.0)   # (CR, N)
    z = _sigmoid(
        jnp.dot(caw2_ref[...], z.astype(jnp.bfloat16),
                preferred_element_type=jnp.float32) + cab2_ref[...])        # (C, N)
    y = y * jnp.dot(z.astype(jnp.bfloat16), sels_ref[...],
                    preferred_element_type=jnp.float32)              # per-image gate

    # ---------------- PALayer (pixel attention) ----------------
    p = jnp.maximum(
        jnp.dot(paw1_ref[...], y.astype(jnp.bfloat16),
                preferred_element_type=jnp.float32) + pab1_ref[...], 0.0)   # (CR, L)
    p = _sigmoid(
        jnp.dot(paw2_ref[...], p.astype(jnp.bfloat16),
                preferred_element_type=jnp.float32) + pab2_ref[...])        # (1, L)
    y = y * p

    # ---------------- outer residual ----------------
    o_ref[...] = (y + x).astype(o_ref.dtype)              # lane-dense (C, L) store


# ----------------------------- wrapper -------------------------------
def _res2capa_impl(x_nchw, params):
    n, ch, h, w = x_nchw.shape
    assert (ch, h, w) == (N_FEATS, H_IMG, W_IMG)
    L = n * h * w

    # NCHW -> (C, N*H*W): channels on sublanes, batch*spatial lane-dense.
    # These layout ops are compiled once under the jit below.
    x_cl = jnp.transpose(x_nchw, (1, 0, 2, 3)).reshape(ch, L)

    out = pl.pallas_call(
        res2capa_kernel,
        out_shape=jax.ShapeDtypeStruct((ch, L), jnp.float32),
        scratch_shapes=[pltpu.VMEM((9 * WIDTH_PAD, L), jnp.float32),      # im2col slab
                        pltpu.VMEM((SCALE * WIDTH_PAD, L), jnp.float32)], # chunk concat
    )(x_cl, params["w1t"], params["w3k"], params["wot"], params["masks"],
      params["poolp"], params["sels"],
      params["caw1t"], params["cab1"], params["caw2t"], params["cab2"],
      params["paw1t"], params["pab1"], params["paw2t"], params["pab2"])

    # back to NCHW
    return jnp.transpose(out.reshape(ch, n, h, w), (1, 0, 2, 3))


res2capa_forward = jax.jit(_res2capa_impl)


# ------------------------ deterministic params ------------------------
def _stencil_masks(n, h, w):
    """(9, WIDTH_PAD, n*h*w) 0/1 masks: SAME zero padding for the 3x3 taps,
    pre-broadcast to the chunk width so no broadcast is emitted in-kernel."""
    l = np.arange(n * h * w)
    hh = (l % (h * w)) // w
    ww = l % w
    rows = []
    for dy in (-1, 0, 1):
        for dx in (-1, 0, 1):
            valid = (hh + dy >= 0) & (hh + dy < h) & (ww + dx >= 0) & (ww + dx < w)
            rows.append(valid.astype(np.float32))
    m = np.stack(rows).reshape(9, 1, n * h * w)
    return np.broadcast_to(m, (9, WIDTH_PAD, n * h * w)).copy()


def init_params(key):
    ks = jax.random.split(key, 11)
    f = lambda k, shape: jax.random.normal(k, shape, jnp.float32) * 0.1
    ws = WIDTH * SCALE
    bf16 = jnp.bfloat16

    conv1_w = f(ks[0], (N_FEATS, ws))                  # x @ conv1_w  (1x1 conv)
    conv3x3_w = f(ks[1], (NUMS, 3, 3, WIDTH, WIDTH))   # HWIO per scale branch
    convout_w = f(ks[2], (ws, N_FEATS))                # 1x1 conv3
    ca_w1 = f(ks[3], (N_FEATS, CR)); ca_b1 = f(ks[4], (CR,))
    ca_w2 = f(ks[5], (CR, N_FEATS)); ca_b2 = f(ks[6], (N_FEATS,))
    pa_w1 = f(ks[7], (N_FEATS, CR)); pa_b1 = f(ks[8], (CR,))
    pa_w2 = f(ks[9], (CR, 1)); pa_b2 = f(ks[10], (1,))

    pad = WIDTH_PAD - WIDTH

    # conv1 as (out, in), rows grouped per scale chunk and padded to 8 rows.
    w1t = jnp.pad(conv1_w.T.reshape(SCALE, WIDTH, N_FEATS),
                  ((0, 0), (0, pad), (0, 0))).reshape(SCALE * WIDTH_PAD, N_FEATS)
    # per-branch stacked 3x3 taps: (out_pad, 9*in_pad), tap-major (ky, kx).
    w3t = jnp.transpose(conv3x3_w, (0, 4, 1, 2, 3))          # (i, out, ky, kx, in)
    w3k = jnp.pad(w3t, ((0, 0), (0, pad), (0, 0), (0, 0), (0, pad)))
    w3k = w3k.reshape(NUMS, WIDTH_PAD, 9 * WIDTH_PAD)
    # conv3 as (C_out, SCALE*WIDTH_PAD) with zero columns at the chunk padding.
    wot = jnp.pad(convout_w.T.reshape(N_FEATS, SCALE, WIDTH),
                  ((0, 0), (0, 0), (0, pad))).reshape(N_FEATS, SCALE * WIDTH_PAD)

    # Host-built device constants (uploaded once here, reused every call).
    n, h, w, L = BATCH, H_IMG, W_IMG, LANES
    masks = jnp.asarray(_stencil_masks(n, h, w))                              # f32
    poolp = jnp.asarray(np.kron(np.eye(n), np.ones((h * w, 1))) / (h * w), bf16)  # (L, N)
    sels = jnp.asarray(np.kron(np.eye(n), np.ones((1, h * w))), bf16)             # (N, L)

    return dict(
        # canonical f32 forms (used by the pure-JAX reference)
        conv1_w=conv1_w, conv3x3_w=conv3x3_w, convout_w=convout_w,
        ca_w1_c=ca_w1, ca_b1_c=ca_b1, ca_w2_c=ca_w2, ca_b2_c=ca_b2,
        pa_w1_c=pa_w1, pa_b1_c=pa_b1, pa_w2_c=pa_w2, pa_b2_c=pa_b2,
        # kernel-layout forms: bf16 MXU operands, f32 pre-broadcast biases.
        w1t=w1t.astype(bf16), w3k=w3k.astype(bf16), wot=wot.astype(bf16),
        masks=masks, poolp=poolp, sels=sels,
        caw1t=ca_w1.T.astype(bf16),
        cab1=jnp.broadcast_to(ca_b1.reshape(CR, 1), (CR, n)),
        caw2t=ca_w2.T.astype(bf16),
        cab2=jnp.broadcast_to(ca_b2.reshape(N_FEATS, 1), (N_FEATS, n)),
        paw1t=pa_w1.T.astype(bf16),
        pab1=jnp.broadcast_to(pa_b1.reshape(CR, 1), (CR, L)),
        paw2t=pa_w2.T.astype(bf16),
        pab2=jnp.broadcast_to(pa_b2.reshape(1, 1), (1, L)),
    )


# --------------------------- JAX reference ----------------------------
def reference_forward(x_nchw, params):
    hi = lax.Precision.HIGHEST
    x = jnp.transpose(x_nchw, (0, 2, 3, 1))            # NHWC

    out = _leaky(jnp.einsum("nhwc,cd->nhwd", x, params["conv1_w"], precision=hi))
    spx = [out[..., i * WIDTH:(i + 1) * WIDTH] for i in range(SCALE)]
    chunks = []
    sp = None
    for i in range(NUMS):
        sp = spx[i] if i == 0 else sp + spx[i]
        sp = lax.conv_general_dilated(
            sp, params["conv3x3_w"][i], window_strides=(1, 1), padding="SAME",
            dimension_numbers=("NHWC", "HWIO", "NHWC"), precision=hi)
        sp = _leaky(sp)
        chunks.append(sp)
    chunks.append(spx[NUMS])
    cat = jnp.concatenate(chunks, axis=-1)
    y = _leaky(jnp.einsum("nhwd,dc->nhwc", cat, params["convout_w"], precision=hi) + x)

    pooled = jnp.mean(y, axis=(1, 2), keepdims=True)
    z = jax.nn.relu(jnp.einsum("nijc,cd->nijd", pooled, params["ca_w1_c"],
                               precision=hi) + params["ca_b1_c"])
    z = jax.nn.sigmoid(jnp.einsum("nijd,dc->nijc", z, params["ca_w2_c"],
                                  precision=hi) + params["ca_b2_c"])
    y = y * z

    p = jax.nn.relu(jnp.einsum("nhwc,cd->nhwd", y, params["pa_w1_c"],
                               precision=hi) + params["pa_b1_c"])
    p = jax.nn.sigmoid(jnp.einsum("nhwd,do->nhwo", p, params["pa_w2_c"],
                                  precision=hi) + params["pa_b2_c"])
    y = y * p

    y = y + x
    return jnp.transpose(y, (0, 3, 1, 2))


# ------------------------------- main ---------------------------------
if __name__ == "__main__":
    key = jax.random.PRNGKey(0)
    pkey, xkey = jax.random.split(key)
    params = init_params(pkey)
    x = jax.random.normal(xkey, (BATCH, N_FEATS, H_IMG, W_IMG), jnp.float32)

    out = jax.block_until_ready(res2capa_forward(x, params))
    ref = jax.block_until_ready(reference_forward(x, params))

    err = float(jnp.max(jnp.abs(out - ref)))
    if not bool(jnp.allclose(out, ref, atol=2e-2, rtol=2e-2)):
        raise AssertionError(f"Pallas kernel mismatch vs JAX reference, max abs err = {err}")
    print("KERNEL_OK")
</pallas_src>

<mosaic_0001>
module attributes {stable_mosaic.version = 11 : i64} {
  func.func @res2capa_kernel(%arg0: memref<16x128xf32, #tpu.memory_space<vmem>>, %arg1: memref<32x16xbf16, #tpu.memory_space<vmem>>, %arg2: memref<3x8x72xbf16, #tpu.memory_space<vmem>>, %arg3: memref<16x32xbf16, #tpu.memory_space<vmem>>, %arg4: memref<9x8x128xf32, #tpu.memory_space<vmem>>, %arg5: memref<128x2xbf16, #tpu.memory_space<vmem>>, %arg6: memref<2x128xbf16, #tpu.memory_space<vmem>>, %arg7: memref<2x16xbf16, #tpu.memory_space<vmem>>, %arg8: memref<2x2xf32, #tpu.memory_space<vmem>>, %arg9: memref<16x2xbf16, #tpu.memory_space<vmem>>, %arg10: memref<16x2xf32, #tpu.memory_space<vmem>>, %arg11: memref<2x16xbf16, #tpu.memory_space<vmem>>, %arg12: memref<2x128xf32, #tpu.memory_space<vmem>>, %arg13: memref<1x2xbf16, #tpu.memory_space<vmem>>, %arg14: memref<1x128xf32, #tpu.memory_space<vmem>>, %arg15: memref<16x128xf32, #tpu.memory_space<vmem>>, %arg16: memref<72x128xf32, #tpu.memory_space<vmem>>, %arg17: memref<32x128xf32, #tpu.memory_space<vmem>>) attributes {dimension_semantics = [], scalar_prefetch = 0 : i64, scratch_operands = 2 : i64, tpu.core_type = #tpu.core_type<tc>} {
    %c0 = arith.constant 0 : index
    %c0_0 = arith.constant 0 : index
    %0 = vector.load %arg0[%c0, %c0_0] : memref<16x128xf32, #tpu.memory_space<vmem>>, vector<16x128xf32>
    %c0_1 = arith.constant 0 : index
    %c0_2 = arith.constant 0 : index
    %1 = vector.load %arg1[%c0_1, %c0_2] : memref<32x16xbf16, #tpu.memory_space<vmem>>, vector<32x16xbf16>
    %2 = arith.truncf %0 : vector<16x128xf32> to vector<16x128xbf16>
    %cst = arith.constant dense<0.000000e+00> : vector<32x128xf32>
    %3 = tpu.matmul %1, %2, %cst {dimension_numbers = #tpu.dot_dimension_numbers<[1], [0], [0], [1], [0, 0, 1, 1], [], []>} : vector<32x16xbf16>, vector<16x128xbf16>, vector<32x128xf32> -> vector<32x128xf32>
    %cst_3 = arith.constant 0.00999999977 : f32
    %4 = vector.broadcast %cst_3 : f32 to vector<32x128xf32>
    %5 = arith.mulf %4, %3 : vector<32x128xf32>
    %6 = arith.maximumf %3, %5 : vector<32x128xf32>
    %7 = vector.extract_strided_slice %6 {offsets = [0, 0], sizes = [8, 128], strides = [1, 1]} : vector<32x128xf32> to vector<8x128xf32>
    %8 = vector.extract_strided_slice %6 {offsets = [8, 0], sizes = [8, 128], strides = [1, 1]} : vector<32x128xf32> to vector<8x128xf32>
    %9 = vector.extract_strided_slice %6 {offsets = [16, 0], sizes = [8, 128], strides = [1, 1]} : vector<32x128xf32> to vector<8x128xf32>
    %10 = vector.extract_strided_slice %6 {offsets = [24, 0], sizes = [8, 128], strides = [1, 1]} : vector<32x128xf32> to vector<8x128xf32>
    %c0_4 = arith.constant 0 : index
    %c0_5 = arith.constant 0 : index
    %c0_6 = arith.constant 0 : index
    %11 = vector.load %arg4[%c0_4, %c0_5, %c0_6] : memref<9x8x128xf32, #tpu.memory_space<vmem>>, vector<1x8x128xf32>
    %12 = vector.shape_cast %11 : vector<1x8x128xf32> to vector<8x128xf32>
    %c1 = arith.constant 1 : index
    %c0_7 = arith.constant 0 : index
    %c0_8 = arith.constant 0 : index
    %13 = vector.load %arg4[%c1, %c0_7, %c0_8] : memref<9x8x128xf32, #tpu.memory_space<vmem>>, vector<1x8x128xf32>
    %14 = vector.shape_cast %13 : vector<1x8x128xf32> to vector<8x128xf32>
    %c2 = arith.constant 2 : index
    %c0_9 = arith.constant 0 : index
    %c0_10 = arith.constant 0 : index
    %15 = vector.load %arg4[%c2, %c0_9, %c0_10] : memref<9x8x128xf32, #tpu.memory_space<vmem>>, vector<1x8x128xf32>
    %16 = vector.shape_cast %15 : vector<1x8x128xf32> to vector<8x128xf32>
    %c3 = arith.constant 3 : index
    %c0_11 = arith.constant 0 : index
    %c0_12 = arith.constant 0 : index
    %17 = vector.load %arg4[%c3, %c0_11, %c0_12] : memref<9x8x128xf32, #tpu.memory_space<vmem>>, vector<1x8x128xf32>
    %18 = vector.shape_cast %17 : vector<1x8x128xf32> to vector<8x128xf32>
    %c5 = arith.constant 5 : index
    %c0_13 = arith.constant 0 : index
    %c0_14 = arith.constant 0 : index
    %19 = vector.load %arg4[%c5, %c0_13, %c0_14] : memref<9x8x128xf32, #tpu.memory_space<vmem>>, vector<1x8x128xf32>
    %20 = vector.shape_cast %19 : vector<1x8x128xf32> to vector<8x128xf32>
    %c6 = arith.constant 6 : index
    %c0_15 = arith.constant 0 : index
    %c0_16 = arith.constant 0 : index
    %21 = vector.load %arg4[%c6, %c0_15, %c0_16] : memref<9x8x128xf32, #tpu.memory_space<vmem>>, vector<1x8x128xf32>
    %22 = vector.shape_cast %21 : vector<1x8x128xf32> to vector<8x128xf32>
    %c7 = arith.constant 7 : index
    %c0_17 = arith.constant 0 : index
    %c0_18 = arith.constant 0 : index
    %23 = vector.load %arg4[%c7, %c0_17, %c0_18] : memref<9x8x128xf32, #tpu.memory_space<vmem>>, vector<1x8x128xf32>
    %24 = vector.shape_cast %23 : vector<1x8x128xf32> to vector<8x128xf32>
    %c8 = arith.constant 8 : index
    %c0_19 = arith.constant 0 : index
    %c0_20 = arith.constant 0 : index
    %25 = vector.load %arg4[%c8, %c0_19, %c0_20] : memref<9x8x128xf32, #tpu.memory_space<vmem>>, vector<1x8x128xf32>
    %26 = vector.shape_cast %25 : vector<1x8x128xf32> to vector<8x128xf32>
    %c9_i32 = arith.constant 9 : i32
    %27 = tpu.dynamic_rotate %7 by %c9_i32 dim 1 : vector<8x128xf32>, i32 -> vector<8x128xf32>
    %28 = arith.mulf %27, %12 : vector<8x128xf32>
    %c0_21 = arith.constant 0 : index
    %c0_22 = arith.constant 0 : index
    %29 = vector.load %arg16[%c0_21, %c0_22] : memref<72x128xf32, #tpu.memory_space<vmem>>, vector<8x128xf32>
    tpu.vector_store %arg16[%c0_21, %c0_22], %28 {strides = array<i32>} : memref<72x128xf32, #tpu.memory_space<vmem>>, vector<8x128xf32>,
    %c8_i32 = arith.constant 8 : i32
    %30 = tpu.dynamic_rotate %7 by %c8_i32 dim 1 : vector<8x128xf32>, i32 -> vector<8x128xf32>
    %31 = arith.mulf %30, %14 : vector<8x128xf32>
    %c8_23 = arith.constant 8 : index
    %c0_24 = arith.constant 0 : index
    %32 = vector.load %arg16[%c8_23, %c0_24] : memref<72x128xf32, #tpu.memory_space<vmem>>, vector<8x128xf32>
    tpu.vector_store %arg16[%c8_23, %c0_24], %31 {strides = array<i32>} : memref<72x128xf32, #tpu.memory_space<vmem>>, vector<8x128xf32>,
    %c7_i32 = arith.constant 7 : i32
    %33 = tpu.dynamic_rotate %7 by %c7_i32 dim 1 : vector<8x128xf32>, i32 -> vector<8x128xf32>
    %34 = arith.mulf %33, %16 : vector<8x128xf32>
    %c16 = arith.constant 16 : index
    %c0_25 = arith.constant 0 : index
    %35 = vector.load %arg16[%c16, %c0_25] : memref<72x128xf32, #tpu.memory_space<vmem>>, vector<8x128xf32>
    tpu.vector_store %arg16[%c16, %c0_25], %34 {strides = array<i32>} : memref<72x128xf32, #tpu.memory_space<vmem>>, vector<8x128xf32>,
    %c1_i32 = arith.constant 1 : i32
    %36 = tpu.dynamic_rotate %7 by %c1_i32 dim 1 : vector<8x128xf32>, i32 -> vector<8x128xf32>
    %37 = arith.mulf %36, %18 : vector<8x128xf32>
    %c24 = arith.constant 24 : index
    %c0_26 = arith.constant 0 : index
    %38 = vector.load %arg16[%c24, %c0_26] : memref<72x128xf32, #tpu.memory_space<vmem>>, vector<8x128xf32>
    tpu.vector_store %arg16[%c24, %c0_26], %37 {strides = array<i32>} : memref<72x128xf32, #tpu.memory_space<vmem>>, vector<8x128xf32>,
    %c32 = arith.constant 32 : index
    %c0_27 = arith.constant 0 : index
    %39 = vector.load %arg16[%c32, %c0_27] : memref<72x128xf32, #tpu.memory_space<vmem>>, vector<8x128xf32>
    tpu.vector_store %arg16[%c32, %c0_27], %7 {strides = array<i32>} : memref<72x128xf32, #tpu.memory_space<vmem>>, vector<8x128xf32>,
    %c127_i32 = arith.constant 127 : i32
    %40 = tpu.dynamic_rotate %7 by %c127_i32 dim 1 : vector<8x128xf32>, i32 -> vector<8x128xf32>
    %41 = arith.mulf %40, %20 : vector<8x128xf32>
    %c40 = arith.constant 40 : index
    %c0_28 = arith.constant 0 : index
    %42 = vector.load %arg16[%c40, %c0_28] : memref<72x128xf32, #tpu.memory_space<vmem>>, vector<8x128xf32>
    tpu.vector_store %arg16[%c40, %c0_28], %41 {strides = array<i32>} : memref<72x128xf32, #tpu.memory_space<vmem>>, vector<8x128xf32>,
    %c121_i32 = arith.constant 121 : i32
    %43 = tpu.dynamic_rotate %7 by %c121_i32 dim 1 : vector<8x128xf32>, i32 -> vector<8x128xf32>
    %44 = arith.mulf %43, %22 : vector<8x128xf32>
    %c48 = arith.constant 48 : index
    %c0_29 = arith.constant 0 : index
    %45 = vector.load %arg16[%c48, %c0_29] : memref<72x128xf32, #tpu.memory_space<vmem>>, vector<8x128xf32>
    tpu.vector_store %arg16[%c48, %c0_29], %44 {strides = array<i32>} : memref<72x128xf32, #tpu.memory_space<vmem>>, vector<8x128xf32>,
    %c120_i32 = arith.constant 120 : i32
    %46 = tpu.dynamic_rotate %7 by %c120_i32 dim 1 : vector<8x128xf32>, i32 -> vector<8x128xf32>
    %47 = arith.mulf %46, %24 : vector<8x128xf32>
    %c56 = arith.constant 56 : index
    %c0_30 = arith.constant 0 : index
    %48 = vector.load %arg16[%c56, %c0_30] : memref<72x128xf32, #tpu.memory_space<vmem>>, vector<8x128xf32>
    tpu.vector_store %arg16[%c56, %c0_30], %47 {strides = array<i32>} : memref<72x128xf32, #tpu.memory_space<vmem>>, vector<8x128xf32>,
    %c119_i32 = arith.constant 119 : i32
    %49 = tpu.dynamic_rotate %7 by %c119_i32 dim 1 : vector<8x128xf32>, i32 -> vector<8x128xf32>
    %50 = arith.mulf %49, %26 : vector<8x128xf32>
    %c64 = arith.constant 64 : index
    %c0_31 = arith.constant 0 : index
    %51 = vector.load %arg16[%c64, %c0_31] : memref<72x128xf32, #tpu.memory_space<vmem>>, vector<8x128xf32>
    tpu.vector_store %arg16[%c64, %c0_31], %50 {strides = array<i32>} : memref<72x128xf32, #tpu.memory_space<vmem>>, vector<8x128xf32>,
    %c0_32 = arith.constant 0 : index
    %c0_33 = arith.constant 0 : index
    %c0_34 = arith.constant 0 : index
    %52 = vector.load %arg2[%c0_32, %c0_33, %c0_34] : memref<3x8x72xbf16, #tpu.memory_space<vmem>>, vector<1x8x72xbf16>
    %53 = vector.shape_cast %52 : vector<1x8x72xbf16> to vector<8x72xbf16>
    %c0_35 = arith.constant 0 : index
    %c0_36 = arith.constant 0 : index
    %54 = vector.load %arg16[%c0_35, %c0_36] : memref<72x128xf32, #tpu.memory_space<vmem>>, vector<72x128xf32>
    %55 = arith.truncf %54 : vector<72x128xf32> to vector<72x128xbf16>
    %cst_37 = arith.constant dense<0.000000e+00> : vector<8x128xf32>
    %56 = tpu.matmul %53, %55, %cst_37 {dimension_numbers = #tpu.dot_dimension_numbers<[1], [0], [0], [1], [0, 0, 1, 1], [], []>} : vector<8x72xbf16>, vector<72x128xbf16>, vector<8x128xf32> -> vector<8x128xf32>
    %cst_38 = arith.constant 0.00999999977 : f32
    %57 = vector.broadcast %cst_38 : f32 to vector<8x128xf32>
    %58 = arith.mulf %57, %56 : vector<8x128xf32>
    %59 = arith.maximumf %56, %58 : vector<8x128xf32>
    %c0_39 = arith.constant 0 : index
    %c0_40 = arith.constant 0 : index
    %60 = vector.load %arg17[%c0_39, %c0_40] : memref<32x128xf32, #tpu.memory_space<vmem>>, vector<8x128xf32>
    tpu.vector_store %arg17[%c0_39, %c0_40], %59 {strides = array<i32>} : memref<32x128xf32, #tpu.memory_space<vmem>>, vector<8x128xf32>,
    %61 = arith.addf %59, %8 : vector<8x128xf32>
    %c9_i32_41 = arith.constant 9 : i32
    %62 = tpu.dynamic_rotate %61 by %c9_i32_41 dim 1 : vector<8x128xf32>, i32 -> vector<8x128xf32>
    %63 = arith.mulf %62, %12 : vector<8x128xf32>
    %c0_42 = arith.constant 0 : index
    %c0_43 = arith.constant 0 : index
    %64 = vector.load %arg16[%c0_42, %c0_43] : memref<72x128xf32, #tpu.memory_space<vmem>>, vector<8x128xf32>
    tpu.vector_store %arg16[%c0_42, %c0_43], %63 {strides = array<i32>} : memref<72x128xf32, #tpu.memory_space<vmem>>, vector<8x128xf32>,
    %c8_i32_44 = arith.constant 8 : i32
    %65 = tpu.dynamic_rotate %61 by %c8_i32_44 dim 1 : vector<8x128xf32>, i32 -> vector<8x128xf32>
    %66 = arith.mulf %65, %14 : vector<8x128xf32>
    %c8_45 = arith.constant 8 : index
    %c0_46 = arith.constant 0 : index
    %67 = vector.load %arg16[%c8_45, %c0_46] : memref<72x128xf32, #tpu.memory_space<vmem>>, vector<8x128xf32>
    tpu.vector_store %arg16[%c8_45, %c0_46], %66 {strides = array<i32>} : memref<72x128xf32, #tpu.memory_space<vmem>>, vector<8x128xf32>,
    %c7_i32_47 = arith.constant 7 : i32
    %68 = tpu.dynamic_rotate %61 by %c7_i32_47 dim 1 : vector<8x128xf32>, i32 -> vector<8x128xf32>
    %69 = arith.mulf %68, %16 : vector<8x128xf32>
    %c16_48 = arith.constant 16 : index
    %c0_49 = arith.constant 0 : index
    %70 = vector.load %arg16[%c16_48, %c0_49] : memref<72x128xf32, #tpu.memory_space<vmem>>, vector<8x128xf32>
    tpu.vector_store %arg16[%c16_48, %c0_49], %69 {strides = array<i32>} : memref<72x128xf32, #tpu.memory_space<vmem>>, vector<8x128xf32>,
    %c1_i32_50 = arith.constant 1 : i32
    %71 = tpu.dynamic_rotate %61 by %c1_i32_50 dim 1 : vector<8x128xf32>, i32 -> vector<8x128xf32>
    %72 = arith.mulf %71, %18 : vector<8x128xf32>
    %c24_51 = arith.constant 24 : index
    %c0_52 = arith.constant 0 : index
    %73 = vector.load %arg16[%c24_51, %c0_52] : memref<72x128xf32, #tpu.memory_space<vmem>>, vector<8x128xf32>
    tpu.vector_store %arg16[%c24_51, %c0_52], %72 {strides = array<i32>} : memref<72x128xf32, #tpu.memory_space<vmem>>, vector<8x128xf32>,
    %c32_53 = arith.constant 32 : index
    %c0_54 = arith.constant 0 : index
    %74 = vector.load %arg16[%c32_53, %c0_54] : memref<72x128xf32, #tpu.memory_space<vmem>>, vector<8x128xf32>
    tpu.vector_store %arg16[%c32_53, %c0_54], %61 {strides = array<i32>} : memref<72x128xf32, #tpu.memory_space<vmem>>, vector<8x128xf32>,
    %c127_i32_55 = arith.constant 127 : i32
    %75 = tpu.dynamic_rotate %61 by %c127_i32_55 dim 1 : vector<8x128xf32>, i32 -> vector<8x128xf32>
    %76 = arith.mulf %75, %20 : vector<8x128xf32>
    %c40_56 = arith.constant 40 : index
    %c0_57 = arith.constant 0 : index
    %77 = vector.load %arg16[%c40_56, %c0_57] : memref<72x128xf32, #tpu.memory_space<vmem>>, vector<8x128xf32>
    tpu.vector_store %arg16[%c40_56, %c0_57], %76 {strides = array<i32>} : memref<72x128xf32, #tpu.memory_space<vmem>>, vector<8x128xf32>,
    %c121_i32_58 = arith.constant 121 : i32
    %78 = tpu.dynamic_rotate %61 by %c121_i32_58 dim 1 : vector<8x128xf32>, i32 -> vector<8x128xf32>
    %79 = arith.mulf %78, %22 : vector<8x128xf32>
    %c48_59 = arith.constant 48 : index
    %c0_60 = arith.constant 0 : index
    %80 = vector.load %arg16[%c48_59, %c0_60] : memref<72x128xf32, #tpu.memory_space<vmem>>, vector<8x128xf32>
    tpu.vector_store %arg16[%c48_59, %c0_60], %79 {strides = array<i32>} : memref<72x128xf32, #tpu.memory_space<vmem>>, vector<8x128xf32>,
    %c120_i32_61 = arith.constant 120 : i32
    %81 = tpu.dynamic_rotate %61 by %c120_i32_61 dim 1 : vector<8x128xf32>, i32 -> vector<8x128xf32>
    %82 = arith.mulf %81, %24 : vector<8x128xf32>
    %c56_62 = arith.constant 56 : index
    %c0_63 = arith.constant 0 : index
    %83 = vector.load %arg16[%c56_62, %c0_63] : memref<72x128xf32, #tpu.memory_space<vmem>>, vector<8x128xf32>
    tpu.vector_store %arg16[%c56_62, %c0_63], %82 {strides = array<i32>} : memref<72x128xf32, #tpu.memory_space<vmem>>, vector<8x128xf32>,
    %c119_i32_64 = arith.constant 119 : i32
    %84 = tpu.dynamic_rotate %61 by %c119_i32_64 dim 1 : vector<8x128xf32>, i32 -> vector<8x128xf32>
    %85 = arith.mulf %84, %26 : vector<8x128xf32>
    %c64_65 = arith.constant 64 : index
    %c0_66 = arith.constant 0 : index
    %86 = vector.load %arg16[%c64_65, %c0_66] : memref<72x128xf32, #tpu.memory_space<vmem>>, vector<8x128xf32>
    tpu.vector_store %arg16[%c64_65, %c0_66], %85 {strides = array<i32>} : memref<72x128xf32, #tpu.memory_space<vmem>>, vector<8x128xf32>,
    %c1_67 = arith.constant 1 : index
    %c0_68 = arith.constant 0 : index
    %c0_69 = arith.constant 0 : index
    %87 = vector.load %arg2[%c1_67, %c0_68, %c0_69] : memref<3x8x72xbf16, #tpu.memory_space<vmem>>, vector<1x8x72xbf16>
    %88 = vector.shape_cast %87 : vector<1x8x72xbf16> to vector<8x72xbf16>
    %c0_70 = arith.constant 0 : index
    %c0_71 = arith.constant 0 : index
    %89 = vector.load %arg16[%c0_70, %c0_71] : memref<72x128xf32, #tpu.memory_space<vmem>>, vector<72x128xf32>
    %90 = arith.truncf %89 : vector<72x128xf32> to vector<72x128xbf16>
    %cst_72 = arith.constant dense<0.000000e+00> : vector<8x128xf32>
    %91 = tpu.matmul %88, %90, %cst_72 {dimension_numbers = #tpu.dot_dimension_numbers<[1], [0], [0], [1], [0, 0, 1, 1], [], []>} : vector<8x72xbf16>, vector<72x128xbf16>, vector<8x128xf32> -> vector<8x128xf32>
    %cst_73 = arith.constant 0.00999999977 : f32
    %92 = vector.broadcast %cst_73 : f32 to vector<8x128xf32>
    %93 = arith.mulf %92, %91 : vector<8x128xf32>
    %94 = arith.maximumf %91, %93 : vector<8x128xf32>
    %c8_74 = arith.constant 8 : index
    %c0_75 = arith.constant 0 : index
    %95 = vector.load %arg17[%c8_74, %c0_75] : memref<32x128xf32, #tpu.memory_space<vmem>>, vector<8x128xf32>
    tpu.vector_store %arg17[%c8_74, %c0_75], %94 {strides = array<i32>} : memref<32x128xf32, #tpu.memory_space<vmem>>, vector<8x128xf32>,
    %96 = arith.addf %94, %9 : vector<8x128xf32>
    %c9_i32_76 = arith.constant 9 : i32
    %97 = tpu.dynamic_rotate %96 by %c9_i32_76 dim 1 : vector<8x128xf32>, i32 -> vector<8x128xf32>
    %98 = arith.mulf %97, %12 : vector<8x128xf32>
    %c0_77 = arith.constant 0 : index
    %c0_78 = arith.constant 0 : index
    %99 = vector.load %arg16[%c0_77, %c0_78] : memref<72x128xf32, #tpu.memory_space<vmem>>, vector<8x128xf32>
    tpu.vector_store %arg16[%c0_77, %c0_78], %98 {strides = array<i32>} : memref<72x128xf32, #tpu.memory_space<vmem>>, vector<8x128xf32>,
    %c8_i32_79 = arith.constant 8 : i32
    %100 = tpu.dynamic_rotate %96 by %c8_i32_79 dim 1 : vector<8x128xf32>, i32 -> vector<8x128xf32>
    %101 = arith.mulf %100, %14 : vector<8x128xf32>
    %c8_80 = arith.constant 8 : index
    %c0_81 = arith.constant 0 : index
    %102 = vector.load %arg16[%c8_80, %c0_81] : memref<72x128xf32, #tpu.memory_space<vmem>>, vector<8x128xf32>
    tpu.vector_store %arg16[%c8_80, %c0_81], %101 {strides = array<i32>} : memref<72x128xf32, #tpu.memory_space<vmem>>, vector<8x128xf32>,
    %c7_i32_82 = arith.constant 7 : i32
    %103 = tpu.dynamic_rotate %96 by %c7_i32_82 dim 1 : vector<8x128xf32>, i32 -> vector<8x128xf32>
    %104 = arith.mulf %103, %16 : vector<8x128xf32>
    %c16_83 = arith.constant 16 : index
    %c0_84 = arith.constant 0 : index
    %105 = vector.load %arg16[%c16_83, %c0_84] : memref<72x128xf32, #tpu.memory_space<vmem>>, vector<8x128xf32>
    tpu.vector_store %arg16[%c16_83, %c0_84], %104 {strides = array<i32>} : memref<72x128xf32, #tpu.memory_space<vmem>>, vector<8x128xf32>,
    %c1_i32_85 = arith.constant 1 : i32
    %106 = tpu.dynamic_rotate %96 by %c1_i32_85 dim 1 : vector<8x128xf32>, i32 -> vector<8x128xf32>
    %107 = arith.mulf %106, %18 : vector<8x128xf32>
    %c24_86 = arith.constant 24 : index
    %c0_87 = arith.constant 0 : index
    %108 = vector.load %arg16[%c24_86, %c0_87] : memref<72x128xf32, #tpu.memory_space<vmem>>, vector<8x128xf32>
    tpu.vector_store %arg16[%c24_86, %c0_87], %107 {strides = array<i32>} : memref<72x128xf32, #tpu.memory_space<vmem>>, vector<8x128xf32>,
    %c32_88 = arith.constant 32 : index
    %c0_89 = arith.constant 0 : index
    %109 = vector.load %arg16[%c32_88, %c0_89] : memref<72x128xf32, #tpu.memory_space<vmem>>, vector<8x128xf32>
    tpu.vector_store %arg16[%c32_88, %c0_89], %96 {strides = array<i32>} : memref<72x128xf32, #tpu.memory_space<vmem>>, vector<8x128xf32>,
    %c127_i32_90 = arith.constant 127 : i32
    %110 = tpu.dynamic_rotate %96 by %c127_i32_90 dim 1 : vector<8x128xf32>, i32 -> vector<8x128xf32>
    %111 = arith.mulf %110, %20 : vector<8x128xf32>
    %c40_91 = arith.constant 40 : index
    %c0_92 = arith.constant 0 : index
    %112 = vector.load %arg16[%c40_91, %c0_92] : memref<72x128xf32, #tpu.memory_space<vmem>>, vector<8x128xf32>
    tpu.vector_store %arg16[%c40_91, %c0_92], %111 {strides = array<i32>} : memref<72x128xf32, #tpu.memory_space<vmem>>, vector<8x128xf32>,
    %c121_i32_93 = arith.constant 121 : i32
    %113 = tpu.dynamic_rotate %96 by %c121_i32_93 dim 1 : vector<8x128xf32>, i32 -> vector<8x128xf32>
    %114 = arith.mulf %113, %22 : vector<8x128xf32>
    %c48_94 = arith.constant 48 : index
    %c0_95 = arith.constant 0 : index
    %115 = vector.load %arg16[%c48_94, %c0_95] : memref<72x128xf32, #tpu.memory_space<vmem>>, vector<8x128xf32>
    tpu.vector_store %arg16[%c48_94, %c0_95], %114 {strides = array<i32>} : memref<72x128xf32, #tpu.memory_space<vmem>>, vector<8x128xf32>,
    %c120_i32_96 = arith.constant 120 : i32
    %116 = tpu.dynamic_rotate %96 by %c120_i32_96 dim 1 : vector<8x128xf32>, i32 -> vector<8x128xf32>
    %117 = arith.mulf %116, %24 : vector<8x128xf32>
    %c56_97 = arith.constant 56 : index
    %c0_98 = arith.constant 0 : index
    %118 = vector.load %arg16[%c56_97, %c0_98] : memref<72x128xf32, #tpu.memory_space<vmem>>, vector<8x128xf32>
    tpu.vector_store %arg16[%c56_97, %c0_98], %117 {strides = array<i32>} : memref<72x128xf32, #tpu.memory_space<vmem>>, vector<8x128xf32>,
    %c119_i32_99 = arith.constant 119 : i32
    %119 = tpu.dynamic_rotate %96 by %c119_i32_99 dim 1 : vector<8x128xf32>, i32 -> vector<8x128xf32>
    %120 = arith.mulf %119, %26 : vector<8x128xf32>
    %c64_100 = arith.constant 64 : index
    %c0_101 = arith.constant 0 : index
    %121 = vector.load %arg16[%c64_100, %c0_101] : memref<72x128xf32, #tpu.memory_space<vmem>>, vector<8x128xf32>
    tpu.vector_store %arg16[%c64_100, %c0_101], %120 {strides = array<i32>} : memref<72x128xf32, #tpu.memory_space<vmem>>, vector<8x128xf32>,
    %c2_102 = arith.constant 2 : index
    %c0_103 = arith.constant 0 : index
    %c0_104 = arith.constant 0 : index
    %122 = vector.load %arg2[%c2_102, %c0_103, %c0_104] : memref<3x8x72xbf16, #tpu.memory_space<vmem>>, vector<1x8x72xbf16>
    %123 = vector.shape_cast %122 : vector<1x8x72xbf16> to vector<8x72xbf16>
    %c0_105 = arith.constant 0 : index
    %c0_106 = arith.constant 0 : index
    %124 = vector.load %arg16[%c0_105, %c0_106] : memref<72x128xf32, #tpu.memory_space<vmem>>, vector<72x128xf32>
    %125 = arith.truncf %124 : vector<72x128xf32> to vector<72x128xbf16>
    %cst_107 = arith.constant dense<0.000000e+00> : vector<8x128xf32>
    %126 = tpu.matmul %123, %125, %cst_107 {dimension_numbers = #tpu.dot_dimension_numbers<[1], [0], [0], [1], [0, 0, 1, 1], [], []>} : vector<8x72xbf16>, vector<72x128xbf16>, vector<8x128xf32> -> vector<8x128xf32>
    %cst_108 = arith.constant 0.00999999977 : f32
    %127 = vector.broadcast %cst_108 : f32 to vector<8x128xf32>
    %128 = arith.mulf %127, %126 : vector<8x128xf32>
    %129 = arith.maximumf %126, %128 : vector<8x128xf32>
    %c16_109 = arith.constant 16 : index
    %c0_110 = arith.constant 0 : index
    %130 = vector.load %arg17[%c16_109, %c0_110] : memref<32x128xf32, #tpu.memory_space<vmem>>, vector<8x128xf32>
    tpu.vector_store %arg17[%c16_109, %c0_110], %129 {strides = array<i32>} : memref<32x128xf32, #tpu.memory_space<vmem>>, vector<8x128xf32>,
    %c24_111 = arith.constant 24 : index
    %c0_112 = arith.constant 0 : index
    %131 = vector.load %arg17[%c24_111, %c0_112] : memref<32x128xf32, #tpu.memory_space<vmem>>, vector<8x128xf32>
    tpu.vector_store %arg17[%c24_111, %c0_112], %10 {strides = array<i32>} : memref<32x128xf32, #tpu.memory_space<vmem>>, vector<8x128xf32>,
    %c0_113 = arith.constant 0 : index
    %c0_114 = arith.constant 0 : index
    %132 = vector.load %arg3[%c0_113, %c0_114] : memref<16x32xbf16, #tpu.memory_space<vmem>>, vector<16x32xbf16>
    %c0_115 = arith.constant 0 : index
    %c0_116 = arith.constant 0 : index
    %133 = vector.load %arg17[%c0_115, %c0_116] : memref<32x128xf32, #tpu.memory_space<vmem>>, vector<32x128xf32>
    %134 = arith.truncf %133 : vector<32x128xf32> to vector<32x128xbf16>
    %cst_117 = arith.constant dense<0.000000e+00> : vector<16x128xf32>
    %135 = tpu.matmul %132, %134, %cst_117 {dimension_numbers = #tpu.dot_dimension_numbers<[1], [0], [0], [1], [0, 0, 1, 1], [], []>} : vector<16x32xbf16>, vector<32x128xbf16>, vector<16x128xf32> -> vector<16x128xf32>
    %136 = arith.addf %135, %0 : vector<16x128xf32>
    %cst_118 = arith.constant 0.00999999977 : f32
    %137 = vector.broadcast %cst_118 : f32 to vector<16x128xf32>
    %138 = arith.mulf %137, %136 : vector<16x128xf32>
    %139 = arith.maximumf %136, %138 : vector<16x128xf32>
    %140 = arith.truncf %139 : vector<16x128xf32> to vector<16x128xbf16>
    %c0_119 = arith.constant 0 : index
    %c0_120 = arith.constant 0 : index
    %141 = vector.load %arg5[%c0_119, %c0_120] : memref<128x2xbf16, #tpu.memory_space<vmem>>, vector<128x2xbf16>
    %cst_121 = arith.constant dense<0.000000e+00> : vector<16x2xf32>
    %142 = tpu.matmul %140, %141, %cst_121 {dimension_numbers = #tpu.dot_dimension_numbers<[1], [0], [0], [1], [0, 0, 1, 1], [], []>} : vector<16x128xbf16>, vector<128x2xbf16>, vector<16x2xf32> -> vector<16x2xf32>
    %c0_122 = arith.constant 0 : index
    %c0_123 = arith.constant 0 : index
    %143 = vector.load %arg7[%c0_122, %c0_123] : memref<2x16xbf16, #tpu.memory_space<vmem>>, vector<2x16xbf16>
    %144 = arith.truncf %142 : vector<16x2xf32> to vector<16x2xbf16>
    %cst_124 = arith.constant dense<0.000000e+00> : vector<2x2xf32>
    %145 = tpu.matmul %143, %144, %cst_124 {dimension_numbers = #tpu.dot_dimension_numbers<[1], [0], [0], [1], [0, 0, 1, 1], [], []>} : vector<2x16xbf16>, vector<16x2xbf16>, vector<2x2xf32> -> vector<2x2xf32>
    %c0_125 = arith.constant 0 : index
    %c0_126 = arith.constant 0 : index
    %146 = vector.load %arg8[%c0_125, %c0_126] : memref<2x2xf32, #tpu.memory_space<vmem>>, vector<2x2xf32>
    %147 = arith.addf %145, %146 : vector<2x2xf32>
    %cst_127 = arith.constant 0.000000e+00 : f32
    %148 = vector.broadcast %cst_127 : f32 to vector<2x2xf32>
    %149 = arith.maximumf %147, %148 : vector<2x2xf32>
    %c0_128 = arith.constant 0 : index
    %c0_129 = arith.constant 0 : index
    %150 = vector.load %arg9[%c0_128, %c0_129] : memref<16x2xbf16, #tpu.memory_space<vmem>>, vector<16x2xbf16>
    %151 = arith.truncf %149 : vector<2x2xf32> to vector<2x2xbf16>
    %cst_130 = arith.constant dense<0.000000e+00> : vector<16x2xf32>
    %152 = tpu.matmul %150, %151, %cst_130 {dimension_numbers = #tpu.dot_dimension_numbers<[1], [0], [0], [1], [0, 0, 1, 1], [], []>} : vector<16x2xbf16>, vector<2x2xbf16>, vector<16x2xf32> -> vector<16x2xf32>
    %c0_131 = arith.constant 0 : index
    %c0_132 = arith.constant 0 : index
    %153 = vector.load %arg10[%c0_131, %c0_132] : memref<16x2xf32, #tpu.memory_space<vmem>>, vector<16x2xf32>
    %154 = arith.addf %152, %153 : vector<16x2xf32>
    %cst_133 = arith.constant 0.000000e+00 : f32
    %155 = vector.broadcast %cst_133 : f32 to vector<16x2xf32>
    %156 = arith.subf %155, %154 : vector<16x2xf32>
    %157 = math.exp %156 : vector<16x2xf32>
    %cst_134 = arith.constant 1.000000e+00 : f32
    %158 = vector.broadcast %cst_134 : f32 to vector<16x2xf32>
    %159 = arith.addf %158, %157 : vector<16x2xf32>
    %160 = tpu.reciprocal %159 {approx = true} : vector<16x2xf32> -> vector<16x2xf32>
    %161 = arith.truncf %160 : vector<16x2xf32> to vector<16x2xbf16>
    %c0_135 = arith.constant 0 : index
    %c0_136 = arith.constant 0 : index
    %162 = vector.load %arg6[%c0_135, %c0_136] : memref<2x128xbf16, #tpu.memory_space<vmem>>, vector<2x128xbf16>
    %cst_137 = arith.constant dense<0.000000e+00> : vector<16x128xf32>
    %163 = tpu.matmul %161, %162, %cst_137 {dimension_numbers = #tpu.dot_dimension_numbers<[1], [0], [0], [1], [0, 0, 1, 1], [], []>} : vector<16x2xbf16>, vector<2x128xbf16>, vector<16x128xf32> -> vector<16x128xf32>
    %164 = arith.mulf %139, %163 : vector<16x128xf32>
    %c0_138 = arith.constant 0 : index
    %c0_139 = arith.constant 0 : index
    %165 = vector.load %arg11[%c0_138, %c0_139] : memref<2x16xbf16, #tpu.memory_space<vmem>>, vector<2x16xbf16>
    %166 = arith.truncf %164 : vector<16x128xf32> to vector<16x128xbf16>
    %cst_140 = arith.constant dense<0.000000e+00> : vector<2x128xf32>
    %167 = tpu.matmul %165, %166, %cst_140 {dimension_numbers = #tpu.dot_dimension_numbers<[1], [0], [0], [1], [0, 0, 1, 1], [], []>} : vector<2x16xbf16>, vector<16x128xbf16>, vector<2x128xf32> -> vector<2x128xf32>
    %c0_141 = arith.constant 0 : index
    %c0_142 = arith.constant 0 : index
    %168 = vector.load %arg12[%c0_141, %c0_142] : memref<2x128xf32, #tpu.memory_space<vmem>>, vector<2x128xf32>
    %169 = arith.addf %167, %168 : vector<2x128xf32>
    %cst_143 = arith.constant 0.000000e+00 : f32
    %170 = vector.broadcast %cst_143 : f32 to vector<2x128xf32>
    %171 = arith.maximumf %169, %170 : vector<2x128xf32>
    %c0_144 = arith.constant 0 : index
    %c0_145 = arith.constant 0 : index
    %172 = vector.load %arg13[%c0_144, %c0_145] : memref<1x2xbf16, #tpu.memory_space<vmem>>, vector<1x2xbf16>
    %173 = arith.truncf %171 : vector<2x128xf32> to vector<2x128xbf16>
    %cst_146 = arith.constant dense<0.000000e+00> : vector<1x128xf32>
    %174 = tpu.matmul %172, %173, %cst_146 {dimension_numbers = #tpu.dot_dimension_numbers<[1], [0], [0], [1], [0, 0, 1, 1], [], []>} : vector<1x2xbf16>, vector<2x128xbf16>, vector<1x128xf32> -> vector<1x128xf32>
    %c0_147 = arith.constant 0 : index
    %c0_148 = arith.constant 0 : index
    %175 = vector.load %arg14[%c0_147, %c0_148] : memref<1x128xf32, #tpu.memory_space<vmem>>, vector<1x128xf32>
    %176 = arith.addf %174, %175 : vector<1x128xf32>
    %cst_149 = arith.constant 0.000000e+00 : f32
    %177 = vector.broadcast %cst_149 : f32 to vector<1x128xf32>
    %178 = arith.subf %177, %176 : vector<1x128xf32>
    %179 = math.exp %178 : vector<1x128xf32>
    %cst_150 = arith.constant 1.000000e+00 : f32
    %180 = vector.broadcast %cst_150 : f32 to vector<1x128xf32>
    %181 = arith.addf %180, %179 : vector<1x128xf32>
    %182 = tpu.reciprocal %181 {approx = true} : vector<1x128xf32> -> vector<1x128xf32>
    %183 = vector.broadcast %182 : vector<1x128xf32> to vector<16x128xf32>
    %184 = arith.mulf %164, %183 : vector<16x128xf32>
    %185 = arith.addf %184, %0 : vector<16x128xf32>
    %c0_151 = arith.constant 0 : index
    %c0_152 = arith.constant 0 : index
    %186 = vector.load %arg15[%c0_151, %c0_152] : memref<16x128xf32, #tpu.memory_space<vmem>>, vector<16x128xf32>
    tpu.vector_store %arg15[%c0_151, %c0_152], %185 {strides = array<i32>} : memref<16x128xf32, #tpu.memory_space<vmem>>, vector<16x128xf32>,
    return
  }
}

</mosaic_0001>

<llo_original>
// kernel: _res2capa_impl.1
$region0: #{_res2capa_impl.1}
  #allocation0 [shape = 'u32[]', space=smem, size = 0x4, offset = 0x4, fixed_abs, tag = 'smem constant byte address 0x4 - core index']
  #allocation1 [shape = 'u32[144,128]{1,0:T(1,128)}', space=vmem, size = 0x12000, scoped, tag = 'internal scratch']
  #allocation2 [shape = 'f32[72,128]{1,0:T(8,128)}', space=vmem, size = 0x9000, scoped, tag = 'scratch operand']
  #allocation3 [shape = 'f32[32,128]{1,0:T(8,128)}', space=vmem, size = 0x4000, scoped, tag = 'scratch operand']
  %s0 = inlined_call_operand.vmem [shape: f32[16,128], index: 0, kind: input, shape index: {}]
  %s1 = inlined_call_operand.vmem [shape: bf16[32,16], index: 1, kind: input, shape index: {}]
  %s2 = inlined_call_operand.vmem [shape: bf16[3,8,72], index: 2, kind: input, shape index: {}]
  %s3 = inlined_call_operand.vmem [shape: bf16[16,32], index: 3, kind: input, shape index: {}]
  %s4 = inlined_call_operand.vmem [shape: f32[9,8,128], index: 4, kind: input, shape index: {}]
  %s5 = inlined_call_operand.vmem [shape: bf16[128,2], index: 5, kind: input, shape index: {}]
  %s6 = inlined_call_operand.vmem [shape: bf16[2,128], index: 6, kind: input, shape index: {}]
  %s7 = inlined_call_operand.vmem [shape: bf16[2,16], index: 7, kind: input, shape index: {}]
  %s8 = inlined_call_operand.vmem [shape: f32[2,2], index: 8, kind: input, shape index: {}]
  %s9 = inlined_call_operand.vmem [shape: bf16[16,2], index: 9, kind: input, shape index: {}]
  %s10 = inlined_call_operand.vmem [shape: f32[16,2], index: 10, kind: input, shape index: {}]
  %s11 = inlined_call_operand.vmem [shape: bf16[2,16], index: 11, kind: input, shape index: {}]
  %s12 = inlined_call_operand.vmem [shape: f32[2,128], index: 12, kind: input, shape index: {}]
  %s13 = inlined_call_operand.vmem [shape: bf16[1,2], index: 13, kind: input, shape index: {}]
  %s14 = inlined_call_operand.vmem [shape: f32[1,128], index: 14, kind: input, shape index: {}]
  %s15 = inlined_call_operand.vmem [shape: f32[16,128], index: 15, kind: output, shape index: {}]
  %s16 = sld [smem:[#allocation0]]
  $region70: #{_res2capa_impl.1} parent=0
    _
  %s18 = ssub.s32 1, %s16
  %s19 = scalar_select 0, %s18, %s16
  // Predicated region
  $region2: #{_res2capa_impl.1} parent=0 // pred_check
    _
  $region3: #{_res2capa_impl.1} parent=0 // pred_check_branch
    %21 = sbr.rel (0) target = $region5
  $region4: #{_res2capa_impl.1} parent=0 // pred_region
    _
  $region5: #{_res2capa_impl.1} parent=0 // pred_fallthru
    _
  // Predicated region
  $region6: #{_res2capa_impl.1} parent=0 // pred_check
    _
  $region7: #{_res2capa_impl.1} parent=0 // pred_check_branch
    %23 = sbr.rel (0) target = $region9
  $region8: #{_res2capa_impl.1} parent=0 // pred_region
    _
  $region9: #{_res2capa_impl.1} parent=0 // pred_fallthru
    _
  // Predicated region
  $region10: #{_res2capa_impl.1} parent=0 // pred_check
    _
  $region11: #{_res2capa_impl.1} parent=0 // pred_check_branch
    %25 = sbr.rel (0) target = $region13
  $region12: #{_res2capa_impl.1} parent=0 // pred_region
    _
  $region13: #{_res2capa_impl.1} parent=0 // pred_fallthru
    _
  // Predicated region
  $region14: #{_res2capa_impl.1} parent=0 // pred_check
    _
  $region15: #{_res2capa_impl.1} parent=0 // pred_check_branch
    %27 = sbr.rel (0) target = $region17
  $region16: #{_res2capa_impl.1} parent=0 // pred_region
    _
  $region17: #{_res2capa_impl.1} parent=0 // pred_fallthru
    _
  // Predicated region
  $region18: #{_res2capa_impl.1} parent=0 // pred_check
    _
  $region19: #{_res2capa_impl.1} parent=0 // pred_check_branch
    %29 = sbr.rel (0) target = $region21
  $region20: #{_res2capa_impl.1} parent=0 // pred_region
    _
  $region21: #{_res2capa_impl.1} parent=0 // pred_fallthru
    _
  // Predicated region
  $region22: #{_res2capa_impl.1} parent=0 // pred_check
    _
  $region23: #{_res2capa_impl.1} parent=0 // pred_check_branch
    %31 = sbr.rel (0) target = $region25
  $region24: #{_res2capa_impl.1} parent=0 // pred_region
    _
  $region25: #{_res2capa_impl.1} parent=0 // pred_fallthru
    _
  // Predicated region
  $region26: #{_res2capa_impl.1} parent=0 // pred_check
    _
  $region27: #{_res2capa_impl.1} parent=0 // pred_check_branch
    %33 = sbr.rel (0) target = $region29
  $region28: #{_res2capa_impl.1} parent=0 // pred_region
    _
  $region29: #{_res2capa_impl.1} parent=0 // pred_fallthru
    _
  // Predicated region
  $region30: #{_res2capa_impl.1} parent=0 // pred_check
    _
  $region31: #{_res2capa_impl.1} parent=0 // pred_check_branch
    %35 = sbr.rel (0) target = $region33
  $region32: #{_res2capa_impl.1} parent=0 // pred_region
    _
  $region33: #{_res2capa_impl.1} parent=0 // pred_fallthru
    _
  // Predicated region
  $region34: #{_res2capa_impl.1} parent=0 // pred_check
    _
  $region35: #{_res2capa_impl.1} parent=0 // pred_check_branch
    %37 = sbr.rel (0) target = $region37
  $region36: #{_res2capa_impl.1} parent=0 // pred_region
    _
  $region37: #{_res2capa_impl.1} parent=0 // pred_fallthru
    _
  // Predicated region
  $region38: #{_res2capa_impl.1} parent=0 // pred_check
    _
  $region39: #{_res2capa_impl.1} parent=0 // pred_check_branch
    %39 = sbr.rel (0) target = $region41
  $region40: #{_res2capa_impl.1} parent=0 // pred_region
    _
  $region41: #{_res2capa_impl.1} parent=0 // pred_fallthru
    _
  // Predicated region
  $region42: #{_res2capa_impl.1} parent=0 // pred_check
    _
  $region43: #{_res2capa_impl.1} parent=0 // pred_check_branch
    %41 = sbr.rel (0) target = $region45
  $region44: #{_res2capa_impl.1} parent=0 // pred_region
    _
  $region45: #{_res2capa_impl.1} parent=0 // pred_fallthru
    _
  // Predicated region
  $region46: #{_res2capa_impl.1} parent=0 // pred_check
    _
  $region47: #{_res2capa_impl.1} parent=0 // pred_check_branch
    %43 = sbr.rel (0) target = $region49
  $region48: #{_res2capa_impl.1} parent=0 // pred_region
    _
  $region49: #{_res2capa_impl.1} parent=0 // pred_fallthru
    _
  // Predicated region
  $region50: #{_res2capa_impl.1} parent=0 // pred_check
    _
  $region51: #{_res2capa_impl.1} parent=0 // pred_check_branch
    %45 = sbr.rel (0) target = $region53
  $region52: #{_res2capa_impl.1} parent=0 // pred_region
    _
  $region53: #{_res2capa_impl.1} parent=0 // pred_fallthru
    _
  // Predicated region
  $region54: #{_res2capa_impl.1} parent=0 // pred_check
    _
  $region55: #{_res2capa_impl.1} parent=0 // pred_check_branch
    %47 = sbr.rel (0) target = $region57
  $region56: #{_res2capa_impl.1} parent=0 // pred_region
    _
  $region57: #{_res2capa_impl.1} parent=0 // pred_fallthru
    _
  // Predicated region
  $region58: #{_res2capa_impl.1} parent=0 // pred_check
    _
  $region59: #{_res2capa_impl.1} parent=0 // pred_check_branch
    %49 = sbr.rel (0) target = $region61
  $region60: #{_res2capa_impl.1} parent=0 // pred_region
    _
  $region61: #{_res2capa_impl.1} parent=0 // pred_fallthru
    _
  %v51 = vld [vmem:[%s0] sm:$0xff]
  %v52 = vld [vmem:[%s0 + $0x8] sm:$0xff]
  %v53 = vld [vmem:[%s1] sm:$0xf]
  %v54 = vld [vmem:[%s1 + $0x4] sm:$0xf]
  %v55 = vld [vmem:[%s1 + $0x8] sm:$0xf]
  %v56 = vld [vmem:[%s1 + $0xc] sm:$0xf]
  %v57 = vpack.c.bf16 %v52, %v51
  %v62 = vunpack.c.l.b16 %v53
  %v63 = vunpack.c.l.b16 %v54
  %v64 = vunpack.c.l.b16 %v55
  %v65 = vunpack.c.l.b16 %v56
  %v66 = vpack.c.b16 %v63, %v62
  %v67 = vpack.c.b16 %v65, %v64
  %vm68 = vcmask 130048
  %v70 = vsel %vm68, %v66, 0
  %v73 = vsel %vm68, %v67, 0
  %75 = vmatprep.subr.bf16.mxu0 0
  %76 = vmatpush1.bf16.msra.mxu0 %v57
  %77 = vmatprep.subr.bf16.mxu0 0
  %78 = vmatpush1.bf16.msra.mxu0 0
  %79 = vmatprep.subr.bf16.mxu0 0
  %80 = vmatpush1.bf16.msra.mxu0 0
  %81 = vmatprep.subr.bf16.mxu0 0
  %82 = vmatpush1.bf16.msra.mxu0 0
  %83 = vmatprep.subr.bf16.mxu0 0
  %84 = vmatpush1.bf16.msra.mxu0 0
  %85 = vmatprep.subr.bf16.mxu0 0
  %86 = vmatpush1.bf16.msra.mxu0 0
  %87 = vmatprep.subr.bf16.mxu0 0
  %88 = vmatpush1.bf16.msra.mxu0 0
  %89 = vmatprep.subr.bf16.mxu0 0
  %90 = vmatpush1.bf16.msra.mxu0 0
  %91 = vmatprep.subr.bf16.mxu0 0
  %92 = vmatpush1.bf16.msra.mxu0 0
  %93 = vmatprep.subr.bf16.mxu0 0
  %94 = vmatpush1.bf16.msra.mxu0 0
  %95 = vmatprep.subr.bf16.mxu0 0
  %96 = vmatpush1.bf16.msra.mxu0 0
  %97 = vmatprep.subr.bf16.mxu0 0
  %98 = vmatpush1.bf16.msra.mxu0 0
  %99 = vmatprep.subr.bf16.mxu0 0
  %100 = vmatpush1.bf16.msra.mxu0 0
  %101 = vmatprep.subr.bf16.mxu0 0
  %102 = vmatpush1.bf16.msra.mxu0 0
  %103 = vmatprep.subr.bf16.mxu0 0
  %104 = vmatpush1.bf16.msra.mxu0 0
  %105 = vmatprep.subr.bf16.mxu0 0
  %106 = vmatpush1.bf16.msra.mxu0 0
  %107 = vmatprep.mubr.bf16.mxu0 0
  %108 = vmatmul.mubr.bf16.gmra.mrb[0].mxu0 %v70
  %v109 = vpop.f32.mrb[0].mxu0
  %v110 = vadd.f32 0.0, %v109
  %v111 = vpop.f32.mrb[0].mxu0
  %v112 = vpop.f32.mrb[0].mxu0
  %v113 = vadd.f32 0.0, %v112
  %v114 = vpop.f32.mrb[0].mxu0
  %115 = vmatprep.mubr.bf16.mxu0 0
  %116 = vmatmul.mubr.bf16.gmra.mrb[0].mxu0 %v73
  %v117 = vpop.f32.mrb[0].mxu0
  %v118 = vadd.f32 0.0, %v117
  %v119 = vpop.f32.mrb[0].mxu0
  %v120 = vpop.f32.mrb[0].mxu0
  %v121 = vadd.f32 0.0, %v120
  %v122 = vpop.f32.mrb[0].mxu0
  %123 = vdwg.mxu0
  %v124 = vmul.f32 %v110, 0.01
  %v125 = vmul.f32 %v113, 0.01
  %v126 = vmul.f32 %v118, 0.01
  %v127 = vmul.f32 %v121, 0.01
  %v128 = vmax.f32 %v110, %v124
  %v129 = vmax.f32 %v113, %v125
  %v130 = vmax.f32 %v118, %v126
  %v131 = vmax.f32 %v121, %v127
  %v132 = vld [vmem:[%s4] sm:$0xff]
  %s133 = scalar_lea.vmem %s4, 8
  %v134 = vld [vmem:[%s133] sm:$0xff]
  %s135 = scalar_lea.vmem %s4, 16
  %v136 = vld [vmem:[%s135] sm:$0xff]
  %s137 = scalar_lea.vmem %s4, 24
  %v138 = vld [vmem:[%s137] sm:$0xff]
  %s139 = scalar_lea.vmem %s4, 40
  %v140 = vld [vmem:[%s139] sm:$0xff]
  %s141 = scalar_lea.vmem %s4, 48
  %v142 = vld [vmem:[%s141] sm:$0xff]
  %s143 = scalar_lea.vmem %s4, 56
  %v144 = vld [vmem:[%s143] sm:$0xff]
  %s145 = scalar_lea.vmem %s4, 64
  %v146 = vld [vmem:[%s145] sm:$0xff]
  %147 = vrot.lane.b32.xlu0 %v128, 9
  %v148 = vpop.permute.xlu0 %147
  %v149 = vmul.f32 %v148, %v132
  %150 = vst [vmem:[#allocation2] sm:$0xff] %v149
  %151 = vrot.lane.b32.xlu0 %v128, 8
  %v152 = vpop.permute.xlu0 %151
  %v153 = vmul.f32 %v152, %v134
  %154 = vst [vmem:[#allocation2 + $0x8] sm:$0xff] %v153
  %155 = vrot.lane.b32.xlu0 %v128, 7
  %v156 = vpop.permute.xlu0 %155
  %v157 = vmul.f32 %v156, %v136
  %158 = vst [vmem:[#allocation2 + $0x10] sm:$0xff] %v157
  %159 = vrot.lane.b32.xlu0 %v128, 1
  %v160 = vpop.permute.xlu0 %159
  %v161 = vmul.f32 %v160, %v138
  %162 = vst [vmem:[#allocation2 + $0x18] sm:$0xff] %v161
  %163 = vst [vmem:[#allocation2 + $0x20] sm:$0xff] %v128
  %164 = vrot.lane.b32.xlu0 %v128, 127
  %v165 = vpop.permute.xlu0 %164
  %v166 = vmul.f32 %v165, %v140
  %167 = vst [vmem:[#allocation2 + $0x28] sm:$0xff] %v166
  %168 = vrot.lane.b32.xlu0 %v128, 121
  %v169 = vpop.permute.xlu0 %168
  %v170 = vmul.f32 %v169, %v142
  %171 = vst [vmem:[#allocation2 + $0x30] sm:$0xff] %v170
  %172 = vrot.lane.b32.xlu0 %v128, 120
  %v173 = vpop.permute.xlu0 %172
  %v174 = vmul.f32 %v173, %v144
  %175 = vst [vmem:[#allocation2 + $0x38] sm:$0xff] %v174
  %176 = vrot.lane.b32.xlu0 %v128, 119
  %v177 = vpop.permute.xlu0 %176
  %v178 = vmul.f32 %v177, %v146
  %179 = vst [vmem:[#allocation2 + $0x40] sm:$0xff] %v178
  %v180 = vld [vmem:[%s2] sm:$0xf]
  %v181 = vld [vmem:[#allocation2] sm:$0xff]
  %v182 = vld [vmem:[#allocation2 + $0x8] sm:$0xff]
  %v183 = vld [vmem:[#allocation2 + $0x10] sm:$0xff]
  %v184 = vld [vmem:[#allocation2 + $0x18] sm:$0xff]
  %v185 = vld [vmem:[#allocation2 + $0x20] sm:$0xff]
  %v186 = vld [vmem:[#allocation2 + $0x28] sm:$0xff]
  %v187 = vld [vmem:[#allocation2 + $0x30] sm:$0xff]
  %v188 = vld [vmem:[#allocation2 + $0x38] sm:$0xff]
  %v189 = vld [vmem:[#allocation2 + $0x40] sm:$0xff]
  %v190 = vpack.c.bf16 %v182, %v181
  %v191 = vpack.c.bf16 %v184, %v183
  %v192 = vpack.c.bf16 %v186, %v185
  %v193 = vpack.c.bf16 %v188, %v187
  %v194 = vpack.c.bf16 %v189, %v189
  %vm195 = vcmask 588800
  %v197 = vsel %vm195, %v180, 0
  %vm199 = vcmask 1043456
  %v201 = vsel %vm199, %v194, 0
  %203 = vmatprep.subr.bf16.mxu0 0
  %204 = vmatpush1.bf16.msra.mxu0 %v190
  %205 = vmatprep.subr.bf16.mxu0 0
  %206 = vmatpush1.bf16.msra.mxu0 %v191
  %207 = vmatprep.subr.bf16.mxu0 0
  %208 = vmatpush1.bf16.msra.mxu0 %v192
  %209 = vmatprep.subr.bf16.mxu0 0
  %210 = vmatpush1.bf16.msra.mxu0 %v193
  %211 = vmatprep.subr.bf16.mxu0 0
  %212 = vmatpush1.bf16.msra.mxu0 %v201
  %213 = vmatprep.subr.bf16.mxu0 0
  %214 = vmatpush1.bf16.msra.mxu0 0
  %215 = vmatprep.subr.bf16.mxu0 0
  %216 = vmatpush1.bf16.msra.mxu0 0
  %217 = vmatprep.subr.bf16.mxu0 0
  %218 = vmatpush1.bf16.msra.mxu0 0
  %219 = vmatprep.subr.bf16.mxu0 0
  %220 = vmatpush1.bf16.msra.mxu0 0
  %221 = vmatprep.subr.bf16.mxu0 0
  %222 = vmatpush1.bf16.msra.mxu0 0
  %223 = vmatprep.subr.bf16.mxu0 0
  %224 = vmatpush1.bf16.msra.mxu0 0
  %225 = vmatprep.subr.bf16.mxu0 0
  %226 = vmatpush1.bf16.msra.mxu0 0
  %227 = vmatprep.subr.bf16.mxu0 0
  %228 = vmatpush1.bf16.msra.mxu0 0
  %229 = vmatprep.subr.bf16.mxu0 0
  %230 = vmatpush1.bf16.msra.mxu0 0
  %231 = vmatprep.subr.bf16.mxu0 0
  %232 = vmatpush1.bf16.msra.mxu0 0
  %233 = vmatprep.subr.bf16.mxu0 0
  %234 = vmatpush1.bf16.msra.mxu0 0
  %235 = vmatprep.mubr.bf16.mxu0 0
  %236 = vmatmul.mubr.bf16.gmra.mrb[0].mxu0 %v197
  %v237 = vpop.f32.mrb[0].mxu0
  %v238 = vadd.f32 0.0, %v237
  %v239 = vpop.f32.mrb[0].mxu0
  %v240 = vpop.f32.mrb[0].mxu0
  %v241 = vpop.f32.mrb[0].mxu0
  %242 = vdwg.mxu0
  %v243 = vmul.f32 %v238, 0.01
  %v244 = vmax.f32 %v238, %v243
  %245 = vst [vmem:[#allocation3] sm:$0xff] %v244
  %v246 = vadd.f32 %v244, %v129
  %247 = vrot.lane.b32.xlu0 %v246, 9
  %v248 = vpop.permute.xlu0 %247
  %v249 = vmul.f32 %v248, %v132
  %250 = vst [vmem:[#allocation2] sm:$0xff] %v249
  %251 = vrot.lane.b32.xlu0 %v246, 8
  %v252 = vpop.permute.xlu0 %251
  %v253 = vmul.f32 %v252, %v134
  %254 = vst [vmem:[#allocation2 + $0x8] sm:$0xff] %v253
  %255 = vrot.lane.b32.xlu0 %v246, 7
  %v256 = vpop.permute.xlu0 %255
  %v257 = vmul.f32 %v256, %v136
  %258 = vst [vmem:[#allocation2 + $0x10] sm:$0xff] %v257
  %259 = vrot.lane.b32.xlu0 %v246, 1
  %v260 = vpop.permute.xlu0 %259
  %v261 = vmul.f32 %v260, %v138
  %262 = vst [vmem:[#allocation2 + $0x18] sm:$0xff] %v261
  %263 = vst [vmem:[#allocation2 + $0x20] sm:$0xff] %v246
  %264 = vrot.lane.b32.xlu0 %v246, 127
  %v265 = vpop.permute.xlu0 %264
  %v266 = vmul.f32 %v265, %v140
  %267 = vst [vmem:[#allocation2 + $0x28] sm:$0xff] %v266
  %268 = vrot.lane.b32.xlu0 %v246, 121
  %v269 = vpop.permute.xlu0 %268
  %v270 = vmul.f32 %v269, %v142
  %271 = vst [vmem:[#allocation2 + $0x30] sm:$0xff] %v270
  %272 = vrot.lane.b32.xlu0 %v246, 120
  %v273 = vpop.permute.xlu0 %272
  %v274 = vmul.f32 %v273, %v144
  %275 = vst [vmem:[#allocation2 + $0x38] sm:$0xff] %v274
  %276 = vrot.lane.b32.xlu0 %v246, 119
  %v277 = vpop.permute.xlu0 %276
  %v278 = vmul.f32 %v277, %v146
  %279 = vst [vmem:[#allocation2 + $0x40] sm:$0xff] %v278
  %s280 = scalar_lea.vmem %s2, 4
  %v281 = vld [vmem:[%s280] sm:$0xf]
  %v282 = vld [vmem:[#allocation2] sm:$0xff]
  %v283 = vld [vmem:[#allocation2 + $0x8] sm:$0xff]
  %v284 = vld [vmem:[#allocation2 + $0x10] sm:$0xff]
  %v285 = vld [vmem:[#allocation2 + $0x18] sm:$0xff]
  %v286 = vld [vmem:[#allocation2 + $0x20] sm:$0xff]
  %v287 = vld [vmem:[#allocation2 + $0x28] sm:$0xff]
  %v288 = vld [vmem:[#allocation2 + $0x30] sm:$0xff]
  %v289 = vld [vmem:[#allocation2 + $0x38] sm:$0xff]
  %v290 = vld [vmem:[#allocation2 + $0x40] sm:$0xff]
  %v291 = vpack.c.bf16 %v283, %v282
  %v292 = vpack.c.bf16 %v285, %v284
  %v293 = vpack.c.bf16 %v287, %v286
  %v294 = vpack.c.bf16 %v289, %v288
  %v295 = vpack.c.bf16 %v290, %v290
  %v297 = vsel %vm195, %v281, 0
  %v300 = vsel %vm199, %v295, 0
  %302 = vmatprep.subr.bf16.mxu0 0
  %303 = vmatpush1.bf16.msra.mxu0 %v291
  %304 = vmatprep.subr.bf16.mxu0 0
  %305 = vmatpush1.bf16.msra.mxu0 %v292
  %306 = vmatprep.subr.bf16.mxu0 0
  %307 = vmatpush1.bf16.msra.mxu0 %v293
  %308 = vmatprep.subr.bf16.mxu0 0
  %309 = vmatpush1.bf16.msra.mxu0 %v294
  %310 = vmatprep.subr.bf16.mxu0 0
  %311 = vmatpush1.bf16.msra.mxu0 %v300
  %312 = vmatprep.subr.bf16.mxu0 0
  %313 = vmatpush1.bf16.msra.mxu0 0
  %314 = vmatprep.subr.bf16.mxu0 0
  %315 = vmatpush1.bf16.msra.mxu0 0
  %316 = vmatprep.subr.bf16.mxu0 0
  %317 = vmatpush1.bf16.msra.mxu0 0
  %318 = vmatprep.subr.bf16.mxu0 0
  %319 = vmatpush1.bf16.msra.mxu0 0
  %320 = vmatprep.subr.bf16.mxu0 0
  %321 = vmatpush1.bf16.msra.mxu0 0
  %322 = vmatprep.subr.bf16.mxu0 0
  %323 = vmatpush1.bf16.msra.mxu0 0
  %324 = vmatprep.subr.bf16.mxu0 0
  %325 = vmatpush1.bf16.msra.mxu0 0
  %326 = vmatprep.subr.bf16.mxu0 0
  %327 = vmatpush1.bf16.msra.mxu0 0
  %328 = vmatprep.subr.bf16.mxu0 0
  %329 = vmatpush1.bf16.msra.mxu0 0
  %330 = vmatprep.subr.bf16.mxu0 0
  %331 = vmatpush1.bf16.msra.mxu0 0
  %332 = vmatprep.subr.bf16.mxu0 0
  %333 = vmatpush1.bf16.msra.mxu0 0
  %334 = vmatprep.mubr.bf16.mxu0 0
  %335 = vmatmul.mubr.bf16.gmra.mrb[0].mxu0 %v297
  %v336 = vpop.f32.mrb[0].mxu0
  %v337 = vadd.f32 0.0, %v336
  %v338 = vpop.f32.mrb[0].mxu0
  %v339 = vpop.f32.mrb[0].mxu0
  %v340 = vpop.f32.mrb[0].mxu0
  %341 = vdwg.mxu0
  %v342 = vmul.f32 %v337, 0.01
  %v343 = vmax.f32 %v337, %v342
  %344 = vst [vmem:[#allocation3 + $0x8] sm:$0xff] %v343
  %v345 = vadd.f32 %v343, %v130
  %346 = vrot.lane.b32.xlu0 %v345, 9
  %v347 = vpop.permute.xlu0 %346
  %v348 = vmul.f32 %v347, %v132
  %349 = vst [vmem:[#allocation2] sm:$0xff] %v348
  %350 = vrot.lane.b32.xlu0 %v345, 8
  %v351 = vpop.permute.xlu0 %350
  %v352 = vmul.f32 %v351, %v134
  %353 = vst [vmem:[#allocation2 + $0x8] sm:$0xff] %v352
  %354 = vrot.lane.b32.xlu0 %v345, 7
  %v355 = vpop.permute.xlu0 %354
  %v356 = vmul.f32 %v355, %v136
  %357 = vst [vmem:[#allocation2 + $0x10] sm:$0xff] %v356
  %358 = vrot.lane.b32.xlu0 %v345, 1
  %v359 = vpop.permute.xlu0 %358
  %v360 = vmul.f32 %v359, %v138
  %361 = vst [vmem:[#allocation2 + $0x18] sm:$0xff] %v360
  %362 = vst [vmem:[#allocation2 + $0x20] sm:$0xff] %v345
  %363 = vrot.lane.b32.xlu0 %v345, 127
  %v364 = vpop.permute.xlu0 %363
  %v365 = vmul.f32 %v364, %v140
  %366 = vst [vmem:[#allocation2 + $0x28] sm:$0xff] %v365
  %367 = vrot.lane.b32.xlu0 %v345, 121
  %v368 = vpop.permute.xlu0 %367
  %v369 = vmul.f32 %v368, %v142
  %370 = vst [vmem:[#allocation2 + $0x30] sm:$0xff] %v369
  %371 = vrot.lane.b32.xlu0 %v345, 120
  %v372 = vpop.permute.xlu0 %371
  %v373 = vmul.f32 %v372, %v144
  %374 = vst [vmem:[#allocation2 + $0x38] sm:$0xff] %v373
  %375 = vrot.lane.b32.xlu0 %v345, 119
  %v376 = vpop.permute.xlu0 %375
  %v377 = vmul.f32 %v376, %v146
  %378 = vst [vmem:[#allocation2 + $0x40] sm:$0xff] %v377
  %s379 = scalar_lea.vmem %s2, 8
  %v380 = vld [vmem:[%s379] sm:$0xf]
  %v381 = vld [vmem:[#allocation2] sm:$0xff]
  %v382 = vld [vmem:[#allocation2 + $0x8] sm:$0xff]
  %v383 = vld [vmem:[#allocation2 + $0x10] sm:$0xff]
  %v384 = vld [vmem:[#allocation2 + $0x18] sm:$0xff]
  %v385 = vld [vmem:[#allocation2 + $0x20] sm:$0xff]
  %v386 = vld [vmem:[#allocation2 + $0x28] sm:$0xff]
  %v387 = vld [vmem:[#allocation2 + $0x30] sm:$0xff]
  %v388 = vld [vmem:[#allocation2 + $0x38] sm:$0xff]
  %v389 = vld [vmem:[#allocation2 + $0x40] sm:$0xff]
  %v390 = vpack.c.bf16 %v382, %v381
  %v391 = vpack.c.bf16 %v384, %v383
  %v392 = vpack.c.bf16 %v386, %v385
  %v393 = vpack.c.bf16 %v388, %v387
  %v394 = vpack.c.bf16 %v389, %v389
  %v396 = vsel %vm195, %v380, 0
  %v399 = vsel %vm199, %v394, 0
  %401 = vmatprep.subr.bf16.mxu0 0
  %402 = vmatpush1.bf16.msra.mxu0 %v390
  %403 = vmatprep.subr.bf16.mxu0 0
  %404 = vmatpush1.bf16.msra.mxu0 %v391
  %405 = vmatprep.subr.bf16.mxu0 0
  %406 = vmatpush1.bf16.msra.mxu0 %v392
  %407 = vmatprep.subr.bf16.mxu0 0
  %408 = vmatpush1.bf16.msra.mxu0 %v393
  %409 = vmatprep.subr.bf16.mxu0 0
  %410 = vmatpush1.bf16.msra.mxu0 %v399
  %411 = vmatprep.subr.bf16.mxu0 0
  %412 = vmatpush1.bf16.msra.mxu0 0
  %413 = vmatprep.subr.bf16.mxu0 0
  %414 = vmatpush1.bf16.msra.mxu0 0
  %415 = vmatprep.subr.bf16.mxu0 0
  %416 = vmatpush1.bf16.msra.mxu0 0
  %417 = vmatprep.subr.bf16.mxu0 0
  %418 = vmatpush1.bf16.msra.mxu0 0
  %419 = vmatprep.subr.bf16.mxu0 0
  %420 = vmatpush1.bf16.msra.mxu0 0
  %421 = vmatprep.subr.bf16.mxu0 0
  %422 = vmatpush1.bf16.msra.mxu0 0
  %423 = vmatprep.subr.bf16.mxu0 0
  %424 = vmatpush1.bf16.msra.mxu0 0
  %425 = vmatprep.subr.bf16.mxu0 0
  %426 = vmatpush1.bf16.msra.mxu0 0
  %427 = vmatprep.subr.bf16.mxu0 0
  %428 = vmatpush1.bf16.msra.mxu0 0
  %429 = vmatprep.subr.bf16.mxu0 0
  %430 = vmatpush1.bf16.msra.mxu0 0
  %431 = vmatprep.subr.bf16.mxu0 0
  %432 = vmatpush1.bf16.msra.mxu0 0
  %433 = vmatprep.mubr.bf16.mxu0 0
  %434 = vmatmul.mubr.bf16.gmra.mrb[0].mxu0 %v396
  %v435 = vpop.f32.mrb[0].mxu0
  %v436 = vadd.f32 0.0, %v435
  %v437 = vpop.f32.mrb[0].mxu0
  %v438 = vpop.f32.mrb[0].mxu0
  %v439 = vpop.f32.mrb[0].mxu0
  %440 = vdwg.mxu0
  %v441 = vmul.f32 %v436, 0.01
  %v442 = vmax.f32 %v436, %v441
  %443 = vst [vmem:[#allocation3 + $0x10] sm:$0xff] %v442
  %444 = vst [vmem:[#allocation3 + $0x18] sm:$0xff] %v131
  %v445 = vld [vmem:[%s3] sm:$0xf]
  %v446 = vld [vmem:[%s3 + $0x4] sm:$0xf]
  %v447 = vld [vmem:[#allocation3] sm:$0xff]
  %v448 = vld [vmem:[#allocation3 + $0x8] sm:$0xff]
  %v449 = vld [vmem:[#allocation3 + $0x10] sm:$0xff]
  %v450 = vld [vmem:[#allocation3 + $0x18] sm:$0xff]
  %v451 = vpack.c.bf16 %v448, %v447
  %v452 = vpack.c.bf16 %v450, %v449
  %v455 = vunpack.c.l.b16 %v445
  %v456 = vunpack.c.l.b16 %v446
  %v457 = vpack.c.b16 %v456, %v455
  %vm458 = vcmask 261120
  %v460 = vsel %vm458, %v457, 0
  %462 = vmatprep.subr.bf16.mxu0 0
  %463 = vmatpush1.bf16.msra.mxu0 %v451
  %464 = vmatprep.subr.bf16.mxu0 0
  %465 = vmatpush1.bf16.msra.mxu0 %v452
  %466 = vmatprep.subr.bf16.mxu0 0
  %467 = vmatpush1.bf16.msra.mxu0 0
  %468 = vmatprep.subr.bf16.mxu0 0
  %469 = vmatpush1.bf16.msra.mxu0 0
  %470 = vmatprep.subr.bf16.mxu0 0
  %471 = vmatpush1.bf16.msra.mxu0 0
  %472 = vmatprep.subr.bf16.mxu0 0
  %473 = vmatpush1.bf16.msra.mxu0 0
  %474 = vmatprep.subr.bf16.mxu0 0
  %475 = vmatpush1.bf16.msra.mxu0 0
  %476 = vmatprep.subr.bf16.mxu0 0
  %477 = vmatpush1.bf16.msra.mxu0 0
  %478 = vmatprep.subr.bf16.mxu0 0
  %479 = vmatpush1.bf16.msra.mxu0 0
  %480 = vmatprep.subr.bf16.mxu0 0
  %481 = vmatpush1.bf16.msra.mxu0 0
  %482 = vmatprep.subr.bf16.mxu0 0
  %483 = vmatpush1.bf16.msra.mxu0 0
  %484 = vmatprep.subr.bf16.mxu0 0
  %485 = vmatpush1.bf16.msra.mxu0 0
  %486 = vmatprep.subr.bf16.mxu0 0
  %487 = vmatpush1.bf16.msra.mxu0 0
  %488 = vmatprep.subr.bf16.mxu0 0
  %489 = vmatpush1.bf16.msra.mxu0 0
  %490 = vmatprep.subr.bf16.mxu0 0
  %491 = vmatpush1.bf16.msra.mxu0 0
  %492 = vmatprep.subr.bf16.mxu0 0
  %493 = vmatpush1.bf16.msra.mxu0 0
  %494 = vmatprep.mubr.bf16.mxu0 0
  %495 = vmatmul.mubr.bf16.gmra.mrb[0].mxu0 %v460
  %v496 = vpop.f32.mrb[0].mxu0
  %v497 = vadd.f32 %v51, %v496
  %v498 = vpop.f32.mrb[0].mxu0
  %v499 = vpop.f32.mrb[0].mxu0
  %v500 = vadd.f32 %v52, %v499
  %v501 = vpop.f32.mrb[0].mxu0
  %502 = vdwg.mxu0
  %v503 = vmul.f32 %v497, 0.01
  %v504 = vmul.f32 %v500, 0.01
  %v505 = vmax.f32 %v497, %v503
  %v506 = vmax.f32 %v500, %v504
  %v507 = vpack.c.bf16 %v506, %v505
  %v508 = vld [vmem:[%s5] sm:$0xf]
  %v509 = vld [vmem:[%s5 + $0x4] sm:$0xf]
  %v510 = vld [vmem:[%s5 + $0x8] sm:$0xf]
  %v511 = vld [vmem:[%s5 + $0xc] sm:$0xf]
  %v512 = vld [vmem:[%s5 + $0x10] sm:$0xf]
  %v513 = vld [vmem:[%s5 + $0x14] sm:$0xf]
  %v514 = vld [vmem:[%s5 + $0x18] sm:$0xf]
  %v515 = vld [vmem:[%s5 + $0x1c] sm:$0xf]
  %v516 = vld [vmem:[%s5 + $0x20] sm:$0xf]
  %v517 = vld [vmem:[%s5 + $0x24] sm:$0xf]
  %v518 = vld [vmem:[%s5 + $0x28] sm:$0xf]
  %v519 = vld [vmem:[%s5 + $0x2c] sm:$0xf]
  %v520 = vld [vmem:[%s5 + $0x30] sm:$0xf]
  %v521 = vld [vmem:[%s5 + $0x34] sm:$0xf]
  %v522 = vld [vmem:[%s5 + $0x38] sm:$0xf]
  %v523 = vld [vmem:[%s5 + $0x3c] sm:$0xf]
  %v540 = vunpack.c.l.b16 %v508
  %v541 = vunpack.c.l.b16 %v509
  %v542 = vunpack.c.l.b16 %v510
  %v543 = vunpack.c.l.b16 %v511
  %v544 = vunpack.c.l.b16 %v512
  %v545 = vunpack.c.l.b16 %v513
  %v546 = vunpack.c.l.b16 %v514
  %v547 = vunpack.c.l.b16 %v515
  %v548 = vunpack.c.l.b16 %v516
  %v549 = vunpack.c.l.b16 %v517
  %v550 = vunpack.c.l.b16 %v518
  %v551 = vunpack.c.l.b16 %v519
  %v552 = vunpack.c.l.b16 %v520
  %v553 = vunpack.c.l.b16 %v521
  %v554 = vunpack.c.l.b16 %v522
  %v555 = vunpack.c.l.b16 %v523
  %v556 = vpack.c.b16 %v541, %v540
  %v557 = vpack.c.b16 %v543, %v542
  %v558 = vpack.c.b16 %v545, %v544
  %v559 = vpack.c.b16 %v547, %v546
  %v560 = vpack.c.b16 %v549, %v548
  %v561 = vpack.c.b16 %v551, %v550
  %v562 = vpack.c.b16 %v553, %v552
  %v563 = vpack.c.b16 %v555, %v554
  %572 = vmatprep.subr.bf16.mxu0 0
  %573 = vmatpush1.bf16.msra.mxu0 %v556
  %574 = vmatprep.subr.bf16.mxu0 0
  %575 = vmatpush1.bf16.msra.mxu0 %v557
  %576 = vmatprep.subr.bf16.mxu0 0
  %577 = vmatpush1.bf16.msra.mxu0 %v558
  %578 = vmatprep.subr.bf16.mxu0 0
  %579 = vmatpush1.bf16.msra.mxu0 %v559
  %580 = vmatprep.subr.bf16.mxu0 0
  %581 = vmatpush1.bf16.msra.mxu0 %v560
  %582 = vmatprep.subr.bf16.mxu0 0
  %583 = vmatpush1.bf16.msra.mxu0 %v561
  %584 = vmatprep.subr.bf16.mxu0 0
  %585 = vmatpush1.bf16.msra.mxu0 %v562
  %586 = vmatprep.subr.bf16.mxu0 0
  %587 = vmatpush1.bf16.msra.mxu0 %v563
  %588 = vmatprep.subr.bf16.mxu0 0
  %589 = vmatpush1.bf16.msra.mxu0 0
  %590 = vmatprep.subr.bf16.mxu0 0
  %591 = vmatpush1.bf16.msra.mxu0 0
  %592 = vmatprep.subr.bf16.mxu0 0
  %593 = vmatpush1.bf16.msra.mxu0 0
  %594 = vmatprep.subr.bf16.mxu0 0
  %595 = vmatpush1.bf16.msra.mxu0 0
  %596 = vmatprep.subr.bf16.mxu0 0
  %597 = vmatpush1.bf16.msra.mxu0 0
  %598 = vmatprep.subr.bf16.mxu0 0
  %599 = vmatpush1.bf16.msra.mxu0 0
  %600 = vmatprep.subr.bf16.mxu0 0
  %601 = vmatpush1.bf16.msra.mxu0 0
  %602 = vmatprep.subr.bf16.mxu0 0
  %603 = vmatpush1.bf16.msra.mxu0 0
  %604 = vmatprep.mubr.bf16.mxu0 0
  %605 = vmatmul.mubr.bf16.gmra.mrb[0].mxu0 %v507
  %v606 = vpop.f32.mrb[0].mxu0
  %v607 = vadd.f32 0.0, %v606
  %v608 = vpop.f32.mrb[0].mxu0
  %v609 = vpop.f32.mrb[0].mxu0
  %v610 = vadd.f32 0.0, %v609
  %v611 = vpop.f32.mrb[0].mxu0
  %612 = vdwg.mxu0
  %v613 = vld [vmem:[%s7] sm:$0x1]
  %v614 = vpack.c.bf16 %v610, %v607
  %v615 = vld [vmem:[%s8] sm:$0x3]
  %v617 = vsel %vm68, %v613, 0
  %619 = vmatprep.subr.bf16.mxu0 0
  %620 = vmatpush1.bf16.msra.mxu0 %v614
  %621 = vmatprep.subr.bf16.mxu0 0
  %622 = vmatpush1.bf16.msra.mxu0 0
  %623 = vmatprep.subr.bf16.mxu0 0
  %624 = vmatpush1.bf16.msra.mxu0 0
  %625 = vmatprep.subr.bf16.mxu0 0
  %626 = vmatpush1.bf16.msra.mxu0 0
  %627 = vmatprep.subr.bf16.mxu0 0
  %628 = vmatpush1.bf16.msra.mxu0 0
  %629 = vmatprep.subr.bf16.mxu0 0
  %630 = vmatpush1.bf16.msra.mxu0 0
  %631 = vmatprep.subr.bf16.mxu0 0
  %632 = vmatpush1.bf16.msra.mxu0 0
  %633 = vmatprep.subr.bf16.mxu0 0
  %634 = vmatpush1.bf16.msra.mxu0 0
  %635 = vmatprep.subr.bf16.mxu0 0
  %636 = vmatpush1.bf16.msra.mxu0 0
  %637 = vmatprep.subr.bf16.mxu0 0
  %638 = vmatpush1.bf16.msra.mxu0 0
  %639 = vmatprep.subr.bf16.mxu0 0
  %640 = vmatpush1.bf16.msra.mxu0 0
  %641 = vmatprep.subr.bf16.mxu0 0
  %642 = vmatpush1.bf16.msra.mxu0 0
  %643 = vmatprep.subr.bf16.mxu0 0
  %644 = vmatpush1.bf16.msra.mxu0 0
  %645 = vmatprep.subr.bf16.mxu0 0
  %646 = vmatpush1.bf16.msra.mxu0 0
  %647 = vmatprep.subr.bf16.mxu0 0
  %648 = vmatpush1.bf16.msra.mxu0 0
  %649 = vmatprep.subr.bf16.mxu0 0
  %650 = vmatpush1.bf16.msra.mxu0 0
  %651 = vmatprep.mubr.bf16.mxu0 0
  %652 = vmatmul.mubr.bf16.gmra.mrb[0].mxu0 %v617
  %v653 = vpop.f32.mrb[0].mxu0
  %v654 = vadd.f32 %v615, %v653
  %v655 = vpop.f32.mrb[0].mxu0
  %v656 = vpop.f32.mrb[0].mxu0
  %v657 = vpop.f32.mrb[0].mxu0
  %658 = vdwg.mxu0
  %v659 = vmax.f32 %v654, 0.0
  %v660 = vld [vmem:[%s9] sm:$0xf]
  %v661 = vld [vmem:[%s9 + $0x4] sm:$0xf]
  %v662 = vpack.c.bf16 %v659, %v659
  %v663 = vld [vmem:[%s10] sm:$0xff]
  %v664 = vld [vmem:[%s10 + $0x8] sm:$0xff]
  %v667 = vunpack.c.l.b16 %v660
  %v668 = vunpack.c.l.b16 %v661
  %v669 = vpack.c.b16 %v668, %v667
  %vm670 = vcmask 15360
  %v672 = vsel %vm670, %v669, 0
  %vm674 = vcmask 1040384
  %v676 = vsel %vm674, %v662, 0
  %678 = vmatprep.subr.bf16.mxu0 0
  %679 = vmatpush1.bf16.msra.mxu0 %v676
  %680 = vmatprep.subr.bf16.mxu0 0
  %681 = vmatpush1.bf16.msra.mxu0 0
  %682 = vmatprep.subr.bf16.mxu0 0
  %683 = vmatpush1.bf16.msra.mxu0 0
  %684 = vmatprep.subr.bf16.mxu0 0
  %685 = vmatpush1.bf16.msra.mxu0 0
  %686 = vmatprep.subr.bf16.mxu0 0
  %687 = vmatpush1.bf16.msra.mxu0 0
  %688 = vmatprep.subr.bf16.mxu0 0
  %689 = vmatpush1.bf16.msra.mxu0 0
  %690 = vmatprep.subr.bf16.mxu0 0
  %691 = vmatpush1.bf16.msra.mxu0 0
  %692 = vmatprep.subr.bf16.mxu0 0
  %693 = vmatpush1.bf16.msra.mxu0 0
  %694 = vmatprep.subr.bf16.mxu0 0
  %695 = vmatpush1.bf16.msra.mxu0 0
  %696 = vmatprep.subr.bf16.mxu0 0
  %697 = vmatpush1.bf16.msra.mxu0 0
  %698 = vmatprep.subr.bf16.mxu0 0
  %699 = vmatpush1.bf16.msra.mxu0 0
  %700 = vmatprep.subr.bf16.mxu0 0
  %701 = vmatpush1.bf16.msra.mxu0 0
  %702 = vmatprep.subr.bf16.mxu0 0
  %703 = vmatpush1.bf16.msra.mxu0 0
  %704 = vmatprep.subr.bf16.mxu0 0
  %705 = vmatpush1.bf16.msra.mxu0 0
  %706 = vmatprep.subr.bf16.mxu0 0
  %707 = vmatpush1.bf16.msra.mxu0 0
  %708 = vmatprep.subr.bf16.mxu0 0
  %709 = vmatpush1.bf16.msra.mxu0 0
  %710 = vmatprep.mubr.bf16.mxu0 0
  %711 = vmatmul.mubr.bf16.gmra.mrb[0].mxu0 %v672
  %v712 = vpop.f32.mrb[0].mxu0
  %v713 = vadd.f32 %v663, %v712
  %v714 = vpop.f32.mrb[0].mxu0
  %v715 = vpop.f32.mrb[0].mxu0
  %v716 = vadd.f32 %v664, %v715
  %v717 = vpop.f32.mrb[0].mxu0
  %718 = vdwg.mxu0
  %v719 = vsub.f32 0.0, %v713
  %v720 = vsub.f32 0.0, %v716
  %v721 = vmul.f32 %v719, 1.442695
  %v722 = vpow.pop %v721
  %v723 = vmul.f32 %v720, 1.442695
  %v724 = vpow.pop %v723
  %v725 = vadd.f32 %v722, 1.0
  %v726 = vadd.f32 %v724, 1.0
  %v727 = vrcp.pop %v725
  %v728 = vrcp.pop %v726
  %v729 = vpack.c.bf16 %v728, %v727
  %v730 = vld [vmem:[%s6] sm:$0x1]
  %v732 = vsel %vm670, %v729, 0
  %v735 = vsel %vm674, %v730, 0
  %737 = vmatprep.subr.bf16.mxu0 0
  %738 = vmatpush1.bf16.msra.mxu0 %v735
  %739 = vmatprep.subr.bf16.mxu0 0
  %740 = vmatpush1.bf16.msra.mxu0 0
  %741 = vmatprep.subr.bf16.mxu0 0
  %742 = vmatpush1.bf16.msra.mxu0 0
  %743 = vmatprep.subr.bf16.mxu0 0
  %744 = vmatpush1.bf16.msra.mxu0 0
  %745 = vmatprep.subr.bf16.mxu0 0
  %746 = vmatpush1.bf16.msra.mxu0 0
  %747 = vmatprep.subr.bf16.mxu0 0
  %748 = vmatpush1.bf16.msra.mxu0 0
  %749 = vmatprep.subr.bf16.mxu0 0
  %750 = vmatpush1.bf16.msra.mxu0 0
  %751 = vmatprep.subr.bf16.mxu0 0
  %752 = vmatpush1.bf16.msra.mxu0 0
  %753 = vmatprep.subr.bf16.mxu0 0
  %754 = vmatpush1.bf16.msra.mxu0 0
  %755 = vmatprep.subr.bf16.mxu0 0
  %756 = vmatpush1.bf16.msra.mxu0 0
  %757 = vmatprep.subr.bf16.mxu0 0
  %758 = vmatpush1.bf16.msra.mxu0 0
  %759 = vmatprep.subr.bf16.mxu0 0
  %760 = vmatpush1.bf16.msra.mxu0 0
  %761 = vmatprep.subr.bf16.mxu0 0
  %762 = vmatpush1.bf16.msra.mxu0 0
  %763 = vmatprep.subr.bf16.mxu0 0
  %764 = vmatpush1.bf16.msra.mxu0 0
  %765 = vmatprep.subr.bf16.mxu0 0
  %766 = vmatpush1.bf16.msra.mxu0 0
  %767 = vmatprep.subr.bf16.mxu0 0
  %768 = vmatpush1.bf16.msra.mxu0 0
  %769 = vmatprep.mubr.bf16.mxu0 0
  %770 = vmatmul.mubr.bf16.gmra.mrb[0].mxu0 %v732
  %v771 = vpop.f32.mrb[0].mxu0
  %v772 = vadd.f32 0.0, %v771
  %v773 = vpop.f32.mrb[0].mxu0
  %v774 = vpop.f32.mrb[0].mxu0
  %v775 = vadd.f32 0.0, %v774
  %v776 = vpop.f32.mrb[0].mxu0
  %777 = vdwg.mxu0
  %v778 = vmul.f32 %v505, %v772
  %v779 = vmul.f32 %v506, %v775
  %v780 = vld [vmem:[%s11] sm:$0x1]
  %v781 = vpack.c.bf16 %v779, %v778
  %v782 = vld [vmem:[%s12] sm:$0x3]
  %v784 = vsel %vm68, %v780, 0
  %786 = vmatprep.subr.bf16.mxu0 0
  %787 = vmatpush1.bf16.msra.mxu0 %v781
  %788 = vmatprep.subr.bf16.mxu0 0
  %789 = vmatpush1.bf16.msra.mxu0 0
  %790 = vmatprep.subr.bf16.mxu0 0
  %791 = vmatpush1.bf16.msra.mxu0 0
  %792 = vmatprep.subr.bf16.mxu0 0
  %793 = vmatpush1.bf16.msra.mxu0 0
  %794 = vmatprep.subr.bf16.mxu0 0
  %795 = vmatpush1.bf16.msra.mxu0 0
  %796 = vmatprep.subr.bf16.mxu0 0
  %797 = vmatpush1.bf16.msra.mxu0 0
  %798 = vmatprep.subr.bf16.mxu0 0
  %799 = vmatpush1.bf16.msra.mxu0 0
  %800 = vmatprep.subr.bf16.mxu0 0
  %801 = vmatpush1.bf16.msra.mxu0 0
  %802 = vmatprep.subr.bf16.mxu0 0
  %803 = vmatpush1.bf16.msra.mxu0 0
  %804 = vmatprep.subr.bf16.mxu0 0
  %805 = vmatpush1.bf16.msra.mxu0 0
  %806 = vmatprep.subr.bf16.mxu0 0
  %807 = vmatpush1.bf16.msra.mxu0 0
  %808 = vmatprep.subr.bf16.mxu0 0
  %809 = vmatpush1.bf16.msra.mxu0 0
  %810 = vmatprep.subr.bf16.mxu0 0
  %811 = vmatpush1.bf16.msra.mxu0 0
  %812 = vmatprep.subr.bf16.mxu0 0
  %813 = vmatpush1.bf16.msra.mxu0 0
  %814 = vmatprep.subr.bf16.mxu0 0
  %815 = vmatpush1.bf16.msra.mxu0 0
  %816 = vmatprep.subr.bf16.mxu0 0
  %817 = vmatpush1.bf16.msra.mxu0 0
  %818 = vmatprep.mubr.bf16.mxu0 0
  %819 = vmatmul.mubr.bf16.gmra.mrb[0].mxu0 %v784
  %v820 = vpop.f32.mrb[0].mxu0
  %v821 = vadd.f32 %v782, %v820
  %v822 = vpop.f32.mrb[0].mxu0
  %v823 = vpop.f32.mrb[0].mxu0
  %v824 = vpop.f32.mrb[0].mxu0
  %825 = vdwg.mxu0
  %v826 = vmax.f32 %v821, 0.0
  %v827 = vld [vmem:[%s13] sm:$0x1]
  %v828 = vpack.c.bf16 %v826, %v826
  %v829 = vld [vmem:[%s14] sm:$0x1]
  %v831 = vsel %vm670, %v827, 0
  %v834 = vsel %vm674, %v828, 0
  %836 = vmatprep.subr.bf16.mxu0 0
  %837 = vmatpush1.bf16.msra.mxu0 %v834
  %838 = vmatprep.subr.bf16.mxu0 0
  %839 = vmatpush1.bf16.msra.mxu0 0
  %840 = vmatprep.subr.bf16.mxu0 0
  %841 = vmatpush1.bf16.msra.mxu0 0
  %842 = vmatprep.subr.bf16.mxu0 0
  %843 = vmatpush1.bf16.msra.mxu0 0
  %844 = vmatprep.subr.bf16.mxu0 0
  %845 = vmatpush1.bf16.msra.mxu0 0
  %846 = vmatprep.subr.bf16.mxu0 0
  %847 = vmatpush1.bf16.msra.mxu0 0
  %848 = vmatprep.subr.bf16.mxu0 0
  %849 = vmatpush1.bf16.msra.mxu0 0
  %850 = vmatprep.subr.bf16.mxu0 0
  %851 = vmatpush1.bf16.msra.mxu0 0
  %852 = vmatprep.subr.bf16.mxu0 0
  %853 = vmatpush1.bf16.msra.mxu0 0
  %854 = vmatprep.subr.bf16.mxu0 0
  %855 = vmatpush1.bf16.msra.mxu0 0
  %856 = vmatprep.subr.bf16.mxu0 0
  %857 = vmatpush1.bf16.msra.mxu0 0
  %858 = vmatprep.subr.bf16.mxu0 0
  %859 = vmatpush1.bf16.msra.mxu0 0
  %860 = vmatprep.subr.bf16.mxu0 0
  %861 = vmatpush1.bf16.msra.mxu0 0
  %862 = vmatprep.subr.bf16.mxu0 0
  %863 = vmatpush1.bf16.msra.mxu0 0
  %864 = vmatprep.subr.bf16.mxu0 0
  %865 = vmatpush1.bf16.msra.mxu0 0
  %866 = vmatprep.subr.bf16.mxu0 0
  %867 = vmatpush1.bf16.msra.mxu0 0
  %868 = vmatprep.mubr.bf16.mxu0 0
  %869 = vmatmul.mubr.bf16.gmra.mrb[0].mxu0 %v831
  %v870 = vpop.f32.mrb[0].mxu0
  %v871 = vadd.f32 %v829, %v870
  %v872 = vpop.f32.mrb[0].mxu0
  %v873 = vpop.f32.mrb[0].mxu0
  %v874 = vpop.f32.mrb[0].mxu0
  %875 = vdwg.mxu0
  %v876 = vsub.f32 0.0, %v871
  %v877 = vmul.f32 %v876, 1.442695
  %v878 = vpow.pop %v877
  %v879 = vadd.f32 %v878, 1.0
  %v880 = vrcp.pop %v879
  %v881 = vlaneseq
  %v882 = vshrl.u32 %v881, 7
  %v883 = vsub.s32 0, %v882
  %v884 = vrot.slane %v880, %v883
  %v885 = vmul.f32 %v778, %v884
  %v886 = vmul.f32 %v779, %v884
  %v887 = vadd.f32 %v885, %v51
  %v888 = vadd.f32 %v886, %v52
  %889 = vst [vmem:[%s15] sm:$0xff] %v887
  %890 = vst [vmem:[%s15 + $0x8] sm:$0xff] %v888
  // Predicated region
  $region62: #{_res2capa_impl.1} parent=0 // pred_check
    _
  $region63: #{_res2capa_impl.1} parent=0 // pred_check_branch
    %892 = sbr.rel (0) target = $region65
  $region64: #{_res2capa_impl.1} parent=0 // pred_region
    _
  $region65: #{_res2capa_impl.1} parent=0 // pred_fallthru
    _
  // Predicated region
  $region66: #{_res2capa_impl.1} parent=0 // pred_check
    _
  $region67: #{_res2capa_impl.1} parent=0 // pred_check_branch
    %894 = sbr.rel (0) target = $region69
  $region68: #{_res2capa_impl.1} parent=0 // pred_region
    _
  $region69: #{_res2capa_impl.1} parent=0 // pred_fallthru
    _

</llo_original>
